<compile_context>
chip_gen: v6e
topology: v6e:2x2x1
jax: 0.10.0
libtpu: 0.0.40
codegen_flags: <defaults>
</compile_context>

<pallas_src>
import jax
import jax.numpy as jnp
from jax.experimental import pallas as pl
from jax.experimental.pallas import tpu as pltpu

H1 = 512
H2 = 256


def _round_up(x, m):
    return ((x + m - 1) // m) * m


def mlp_kernel(x_ref, w1_ref, b1_ref, w2_ref, b2_ref, w3_ref, b3_ref, o_ref):
    # x arrives f32 straight from HBM (no wrapper cast); cast to bf16 on the
    # VPU (free slot, hidden under MXU/DMA).  Each matmul accumulates in f32 on
    # the MXU, adds the f32 bias, applies ReLU, and feeds the next matmul in
    # bf16 to keep MXU throughput up and spill bytes low.
    x = x_ref[...].astype(jnp.bfloat16)
    h1 = jnp.dot(x, w1_ref[...], preferred_element_type=jnp.float32) + b1_ref[...]
    h1 = jnp.maximum(h1, 0.0).astype(jnp.bfloat16)
    h2 = jnp.dot(h1, w2_ref[...], preferred_element_type=jnp.float32) + b2_ref[...]
    h2 = jnp.maximum(h2, 0.0).astype(jnp.bfloat16)
    out = jnp.dot(h2, w3_ref[...], preferred_element_type=jnp.float32) + b3_ref[...]
    o_ref[...] = out.astype(o_ref.dtype)  # bf16, lane-dense unmasked store


def prepare_params(params):
    """One-time weight prep (pad to lane-dense 128 multiples + bf16 cast).

    Hoisted out of the per-call forward path: weights are constants, so the
    HBM read+rewrite of ~1 MiB of parameters happens once instead of per call.
    """
    F = params["w1"].shape[0]
    C = params["w3"].shape[1]
    assert params["w1"].shape == (F, H1)
    assert params["w2"].shape == (H1, H2)
    assert params["w3"].shape == (H2, C)

    Fp = _round_up(F, 128)
    Cp = _round_up(C, 128)

    w1 = jnp.zeros((Fp, H1), jnp.bfloat16).at[:F, :].set(params["w1"].astype(jnp.bfloat16))
    w2 = params["w2"].astype(jnp.bfloat16)
    w3 = jnp.zeros((H2, Cp), jnp.bfloat16).at[:, :C].set(params["w3"].astype(jnp.bfloat16))
    # Biases stay f32 (added to the f32 accumulators inside the kernel).
    b1 = params["b1"].reshape(1, H1).astype(jnp.float32)
    b2 = params["b2"].reshape(1, H2).astype(jnp.float32)
    b3 = jnp.zeros((1, Cp), jnp.float32).at[:, :C].set(
        params["b3"].reshape(1, C).astype(jnp.float32))

    return {"w1": w1, "b1": b1, "w2": w2, "b2": b2, "w3": w3, "b3": b3,
            "num_feats": F, "num_classes": C}


def _pick_batch_tile(B):
    """Batch tile that amortizes per-grid-step overhead but keeps >= 2 steps
    (v7x has 2 TensorCores sharded over the parallel batch axis)."""
    Bp_min = _round_up(B, 128)
    if Bp_min < 256:
        return 128  # too small to split; single grid step
    tile = min(1024, Bp_min // 2)
    tile = (tile // 128) * 128
    return max(tile, 128)


def nn_forward(feats, prepped, *, batch_tile=None):
    """feats: [B, numFeats] float32. prepped: output of prepare_params()."""
    B, F = feats.shape
    assert F == prepped["num_feats"]
    C = prepped["num_classes"]
    Fp = prepped["w1"].shape[0]
    Cp = prepped["w3"].shape[1]

    if batch_tile is None:
        batch_tile = _pick_batch_tile(B)
    Bp = _round_up(B, batch_tile)

    # Zero-pad the activations (f32) only when shapes are not already aligned;
    # the bf16 cast happens inside the kernel (VPU, hidden under MXU/DMA).
    if (Bp, Fp) == (B, F):
        x = feats
    else:
        x = jnp.zeros((Bp, Fp), feats.dtype).at[:B, :F].set(feats)

    w1, b1 = prepped["w1"], prepped["b1"]
    w2, b2 = prepped["w2"], prepped["b2"]
    w3, b3 = prepped["w3"], prepped["b3"]

    grid = (Bp // batch_tile,)

    flops = 2 * Bp * (Fp * H1 + H1 * H2 + H2 * Cp)
    bytes_accessed = (
        4 * x.size                                        # f32 activations in
        + 2 * (w1.size + w2.size + w3.size)               # bf16 weights
        + 4 * (b1.size + b2.size + b3.size)               # f32 biases
        + 2 * Bp * Cp                                     # bf16 output
    )

    # NOTE: resident operands (w*, b*) use constant index maps; the extra
    # pipeline buffer they'd otherwise get is negligible (<0.5 MiB), so we skip
    # pl.Buffered(1) to keep lowering maximally portable across chip gens.
    out = pl.pallas_call(
        mlp_kernel,
        out_shape=jax.ShapeDtypeStruct((Bp, Cp), jnp.bfloat16),
        grid_spec=pltpu.PrefetchScalarGridSpec(
            num_scalar_prefetch=0,
            grid=grid,
            in_specs=[
                pl.BlockSpec((batch_tile, Fp), lambda i: (i, 0)),   # x tile (f32)
                pl.BlockSpec((Fp, H1), lambda i: (0, 0)),           # w1 (resident)
                pl.BlockSpec((1, H1), lambda i: (0, 0)),            # b1
                pl.BlockSpec((H1, H2), lambda i: (0, 0)),           # w2 (resident)
                pl.BlockSpec((1, H2), lambda i: (0, 0)),            # b2
                pl.BlockSpec((H2, Cp), lambda i: (0, 0)),           # w3 (resident)
                pl.BlockSpec((1, Cp), lambda i: (0, 0)),            # b3
            ],
            out_specs=pl.BlockSpec((batch_tile, Cp), lambda i: (i, 0)),
        ),
        compiler_params=pltpu.CompilerParams(
            dimension_semantics=("parallel",),          # shard batch tiles across TCs
            vmem_limit_bytes=32 * 1024 * 1024,
        ),
        cost_estimate=pl.CostEstimate(
            flops=flops, transcendentals=0, bytes_accessed=bytes_accessed),
    )(x, w1, b1, w2, b2, w3, b3)

    # Slice off padding rows/cols and return f32 (tiny [B, C] copy).
    return out[:B, :C].astype(jnp.float32)


def init_params(key, num_feats, num_classes):
    """Deterministic synthetic init (PyTorch-like uniform fan-in scaling)."""
    ks = jax.random.split(key, 6)

    def lin(kw, kb, fan_in, fan_out):
        bound = 1.0 / jnp.sqrt(jnp.float32(fan_in))
        w = jax.random.uniform(kw, (fan_in, fan_out), jnp.float32, -bound, bound)
        b = jax.random.uniform(kb, (1, fan_out), jnp.float32, -bound, bound)
        return w, b

    w1, b1 = lin(ks[0], ks[1], num_feats, H1)
    w2, b2 = lin(ks[2], ks[3], H1, H2)
    w3, b3 = lin(ks[4], ks[5], H2, num_classes)
    return {"w1": w1, "b1": b1, "w2": w2, "b2": b2, "w3": w3, "b3": b3}


def nn_forward_ref(feats, params):
    h1 = jnp.maximum(feats @ params["w1"] + params["b1"], 0.0)
    h2 = jnp.maximum(h1 @ params["w2"] + params["b2"], 0.0)
    return h2 @ params["w3"] + params["b3"]


if __name__ == "__main__":
    num_feats = 32
    num_classes = 10
    batch = 256  # -> 2 grid steps at batch_tile=128 (keeps both v7x TCs busy)

    key = jax.random.PRNGKey(0)
    k_x, k_p = jax.random.split(key)

    feats = jax.random.normal(k_x, (batch, num_feats), jnp.float32)
    params = init_params(k_p, num_feats, num_classes)
    prepped = prepare_params(params)  # one-time weight pad + bf16 cast

    out = nn_forward(feats, prepped)
    out = jax.block_until_ready(out)

    ref = nn_forward_ref(feats, params)
    assert out.shape == (batch, num_classes)
    max_err = jnp.max(jnp.abs(out - ref))
    # bf16 matmul operands / bf16 output (f32 accumulation) vs f32 reference.
    assert jnp.allclose(out, ref, atol=5e-2, rtol=5e-2), f"mismatch vs ref, max err {max_err}"

    print("KERNEL_OK")
</pallas_src>

<mosaic_0001>
module attributes {stable_mosaic.version = 11 : i64} {
  func.func @mlp_kernel(%arg0: i32, %arg1: memref<128x128xf32, #tpu.memory_space<vmem>>, %arg2: memref<128x512xbf16, #tpu.memory_space<vmem>>, %arg3: memref<1x512xf32, #tpu.memory_space<vmem>>, %arg4: memref<512x256xbf16, #tpu.memory_space<vmem>>, %arg5: memref<1x256xf32, #tpu.memory_space<vmem>>, %arg6: memref<256x128xbf16, #tpu.memory_space<vmem>>, %arg7: memref<1x128xf32, #tpu.memory_space<vmem>>, %arg8: memref<128x128xbf16, #tpu.memory_space<vmem>>) attributes {dimension_semantics = [#tpu.dimension_semantics<parallel>], iteration_bounds = array<i64: 2>, scalar_prefetch = 0 : i64, scratch_operands = 0 : i64, tpu.core_type = #tpu.core_type<tc>, window_params = [{transform_indices = @transform_0, window_bounds = array<i64: 128, 128>}, {pipeline_mode = #tpu.pipeline_mode<synchronous>, transform_indices = @transform_1, window_bounds = array<i64: 128, 512>}, {pipeline_mode = #tpu.pipeline_mode<synchronous>, transform_indices = @transform_2, window_bounds = array<i64: 1, 512>}, {pipeline_mode = #tpu.pipeline_mode<synchronous>, transform_indices = @transform_3, window_bounds = array<i64: 512, 256>}, {pipeline_mode = #tpu.pipeline_mode<synchronous>, transform_indices = @transform_4, window_bounds = array<i64: 1, 256>}, {pipeline_mode = #tpu.pipeline_mode<synchronous>, transform_indices = @transform_5, window_bounds = array<i64: 256, 128>}, {pipeline_mode = #tpu.pipeline_mode<synchronous>, transform_indices = @transform_6, window_bounds = array<i64: 1, 128>}, {transform_indices = @transform_7, window_bounds = array<i64: 128, 128>}]} {
    %c0 = arith.constant 0 : index
    %c0_0 = arith.constant 0 : index
    %0 = vector.load %arg1[%c0, %c0_0] : memref<128x128xf32, #tpu.memory_space<vmem>>, vector<128x128xf32>
    %1 = arith.truncf %0 : vector<128x128xf32> to vector<128x128xbf16>
    %c0_1 = arith.constant 0 : index
    %c0_2 = arith.constant 0 : index
    %2 = vector.load %arg2[%c0_1, %c0_2] : memref<128x512xbf16, #tpu.memory_space<vmem>>, vector<128x512xbf16>
    %cst = arith.constant dense<0.000000e+00> : vector<128x512xf32>
    %3 = tpu.matmul %1, %2, %cst {dimension_numbers = #tpu.dot_dimension_numbers<[1], [0], [0], [1], [0, 0, 1, 1], [], []>} : vector<128x128xbf16>, vector<128x512xbf16>, vector<128x512xf32> -> vector<128x512xf32>
    %c0_3 = arith.constant 0 : index
    %c0_4 = arith.constant 0 : index
    %4 = vector.load %arg3[%c0_3, %c0_4] : memref<1x512xf32, #tpu.memory_space<vmem>>, vector<1x512xf32>
    %5 = vector.broadcast %4 : vector<1x512xf32> to vector<128x512xf32>
    %6 = arith.addf %3, %5 : vector<128x512xf32>
    %cst_5 = arith.constant 0.000000e+00 : f32
    %7 = vector.broadcast %cst_5 : f32 to vector<128x512xf32>
    %8 = arith.maximumf %6, %7 : vector<128x512xf32>
    %9 = arith.truncf %8 : vector<128x512xf32> to vector<128x512xbf16>
    %c0_6 = arith.constant 0 : index
    %c0_7 = arith.constant 0 : index
    %10 = vector.load %arg4[%c0_6, %c0_7] : memref<512x256xbf16, #tpu.memory_space<vmem>>, vector<512x256xbf16>
    %cst_8 = arith.constant dense<0.000000e+00> : vector<128x256xf32>
    %11 = tpu.matmul %9, %10, %cst_8 {dimension_numbers = #tpu.dot_dimension_numbers<[1], [0], [0], [1], [0, 0, 1, 1], [], []>} : vector<128x512xbf16>, vector<512x256xbf16>, vector<128x256xf32> -> vector<128x256xf32>
    %c0_9 = arith.constant 0 : index
    %c0_10 = arith.constant 0 : index
    %12 = vector.load %arg5[%c0_9, %c0_10] : memref<1x256xf32, #tpu.memory_space<vmem>>, vector<1x256xf32>
    %13 = vector.broadcast %12 : vector<1x256xf32> to vector<128x256xf32>
    %14 = arith.addf %11, %13 : vector<128x256xf32>
    %cst_11 = arith.constant 0.000000e+00 : f32
    %15 = vector.broadcast %cst_11 : f32 to vector<128x256xf32>
    %16 = arith.maximumf %14, %15 : vector<128x256xf32>
    %17 = arith.truncf %16 : vector<128x256xf32> to vector<128x256xbf16>
    %c0_12 = arith.constant 0 : index
    %c0_13 = arith.constant 0 : index
    %18 = vector.load %arg6[%c0_12, %c0_13] : memref<256x128xbf16, #tpu.memory_space<vmem>>, vector<256x128xbf16>
    %cst_14 = arith.constant dense<0.000000e+00> : vector<128x128xf32>
    %19 = tpu.matmul %17, %18, %cst_14 {dimension_numbers = #tpu.dot_dimension_numbers<[1], [0], [0], [1], [0, 0, 1, 1], [], []>} : vector<128x256xbf16>, vector<256x128xbf16>, vector<128x128xf32> -> vector<128x128xf32>
    %c0_15 = arith.constant 0 : index
    %c0_16 = arith.constant 0 : index
    %20 = vector.load %arg7[%c0_15, %c0_16] : memref<1x128xf32, #tpu.memory_space<vmem>>, vector<1x128xf32>
    %21 = vector.broadcast %20 : vector<1x128xf32> to vector<128x128xf32>
    %22 = arith.addf %19, %21 : vector<128x128xf32>
    %23 = arith.truncf %22 : vector<128x128xf32> to vector<128x128xbf16>
    %c0_17 = arith.constant 0 : index
    %c0_18 = arith.constant 0 : index
    %24 = vector.load %arg8[%c0_17, %c0_18] : memref<128x128xbf16, #tpu.memory_space<vmem>>, vector<128x128xbf16>
    tpu.vector_store %arg8[%c0_17, %c0_18], %23 {strides = array<i32>} : memref<128x128xbf16, #tpu.memory_space<vmem>>, vector<128x128xbf16>,
    return
  }
  func.func @transform_0(%arg0: i32) -> (i32, i32) {
    %c0_i32 = arith.constant 0 : i32
    %c0_i32_0 = arith.constant 0 : i32
    return %arg0, %c0_i32 : i32, i32
  }
  func.func @transform_1(%arg0: i32) -> (i32, i32) {
    %c0_i32 = arith.constant 0 : i32
    %c0_i32_0 = arith.constant 0 : i32
    %c0_i32_1 = arith.constant 0 : i32
    return %c0_i32, %c0_i32_0 : i32, i32
  }
  func.func @transform_2(%arg0: i32) -> (i32, i32) {
    %c0_i32 = arith.constant 0 : i32
    %c0_i32_0 = arith.constant 0 : i32
    %c0_i32_1 = arith.constant 0 : i32
    return %c0_i32, %c0_i32_0 : i32, i32
  }
  func.func @transform_3(%arg0: i32) -> (i32, i32) {
    %c0_i32 = arith.constant 0 : i32
    %c0_i32_0 = arith.constant 0 : i32
    %c0_i32_1 = arith.constant 0 : i32
    return %c0_i32, %c0_i32_0 : i32, i32
  }
  func.func @transform_4(%arg0: i32) -> (i32, i32) {
    %c0_i32 = arith.constant 0 : i32
    %c0_i32_0 = arith.constant 0 : i32
    %c0_i32_1 = arith.constant 0 : i32
    return %c0_i32, %c0_i32_0 : i32, i32
  }
  func.func @transform_5(%arg0: i32) -> (i32, i32) {
    %c0_i32 = arith.constant 0 : i32
    %c0_i32_0 = arith.constant 0 : i32
    %c0_i32_1 = arith.constant 0 : i32
    return %c0_i32, %c0_i32_0 : i32, i32
  }
  func.func @transform_6(%arg0: i32) -> (i32, i32) {
    %c0_i32 = arith.constant 0 : i32
    %c0_i32_0 = arith.constant 0 : i32
    %c0_i32_1 = arith.constant 0 : i32
    return %c0_i32, %c0_i32_0 : i32, i32
  }
  func.func @transform_7(%arg0: i32) -> (i32, i32) {
    %c0_i32 = arith.constant 0 : i32
    %c0_i32_0 = arith.constant 0 : i32
    return %arg0, %c0_i32 : i32, i32
  }
}

</mosaic_0001>

<llo_original>
// kernel: tpu_custom_call.1
$region0: #{tpu_custom_call.1}
  #allocation0 [shape = 'u32[]', space=smem, size = 0x4, offset = 0x4, fixed_abs, tag = 'smem constant byte address 0x4 - core index']
  #allocation1 [shape = 'u32[144,128]{1,0:T(1,128)}', space=vmem, size = 0x12000, scoped, tag = 'internal scratch']
  %s0 = inlined_call_operand.hbm [shape: f32[256,128], index: 0, kind: input, shape index: {}]
  %s1 = inlined_call_operand.hbm [shape: bf16[128,512], index: 1, kind: input, shape index: {}]
  %s2 = inlined_call_operand.hbm [shape: f32[1,512], index: 2, kind: input, shape index: {}]
  %s3 = inlined_call_operand.hbm [shape: bf16[512,256], index: 3, kind: input, shape index: {}]
  %s4 = inlined_call_operand.vmem [shape: f32[1,256], index: 4, kind: input, shape index: {}]
  %s5 = inlined_call_operand.hbm [shape: bf16[256,128], index: 5, kind: input, shape index: {}]
  %s6 = inlined_call_operand.vmem [shape: f32[1,128], index: 6, kind: input, shape index: {}]
  %s7 = inlined_call_operand.hbm [shape: bf16[256,128], index: 7, kind: output, shape index: {}]
  %s8 = sld [smem:[#allocation0]]
  $region81: #{tpu_custom_call.1} parent=0
    _
  %s10 = ssub.s32 1, %s8
  %s11 = scalar_select 0, %s10, %s8
  $region1: #{tpu_custom_call.1} parent=0
    #allocation2 [shape = 'u8[131072]{0}', space=vmem, size = 0x20000, scoped, tag = 'input window, operand 0']
    #allocation3 [shape = 's32[2]{0}', space=sflag, size = 0x8, scoped, tag = 'scoped memory for tpu_custom_call.1']
    #allocation4 [shape = 's32[2]{0}', space=sflag, size = 0x8, scoped, tag = 'scoped memory for tpu_custom_call.1']
    #allocation5 [shape = 'u8[131072]{0}', space=vmem, size = 0x20000, scoped, tag = 'input window, operand 1, single buffered']
    #allocation6 [shape = 's32[1]{0}', space=sflag, size = 0x4, scoped, tag = 'scoped memory for tpu_custom_call.1']
    #allocation7 [shape = 'u8[2048]{0}', space=vmem, size = 0x800, scoped, tag = 'input window, operand 2, single buffered']
    #allocation8 [shape = 'u8[262144]{0}', space=vmem, size = 0x40000, scoped, tag = 'input window, operand 3, single buffered']
    #allocation9 [shape = 's32[1]{0}', space=sflag, size = 0x4, scoped, tag = 'scoped memory for tpu_custom_call.1']
    #allocation10 [shape = 'u8[65536]{0}', space=vmem, size = 0x10000, scoped, tag = 'input window, operand 5, single buffered']
    #allocation11 [shape = 'u8[65536]{0}', space=vmem, size = 0x10000, scoped, tag = 'output window, operand 0']
    %12 = vsyncpa [#allocation3], 0
    %s13 = scalar_lea.sflag [#allocation3], 1
    %14 = vsyncpa %s13, 0
    %15 = vsyncpa [#allocation6], 0
    %16 = vsyncpa [#allocation9], 0
    %17 = vsyncpa [#allocation4], 0
    %s18 = scalar_lea.sflag [#allocation4], 1
    %19 = vsyncpa %s18, 0
    loop: start=0, step=1, limit=4
    $region2: #{tpu_custom_call.1} parent=1 // loop_pre_header
      _
    $region3: #{tpu_custom_call.1} parent=1 // loop_header
      %s21 = sphi 0, %s25
      %p22 = scmp.ge.s32.totalorder %s21, 4
      %s31 = sphi 0, %s33
      %s34 = sphi 0, %s31
      %s35 = sphi 0, %s34
      %s51 = sphi 0, %s35
      %s55 = sphi 0, %s55
      %s57 = sphi 0, %s55
      %s58 = sphi 0, %s57
      %s72 = sphi 0, %s58
      %s76 = sphi 0, %s76
      %s78 = sphi 0, %s76
      %s79 = sphi 0, %s78
      %s93 = sphi 0, %s79
      %s97 = sphi 0, %s97
      %s99 = sphi 0, %s97
      %s100 = sphi 0, %s99
      %s114 = sphi 0, %s100
      %s118 = sphi 0, %s118
      %s120 = sphi 0, %s118
      %s121 = sphi 0, %s120
      %s135 = sphi 0, %s121
      %s139 = sphi 0, %s139
      %s141 = sphi 0, %s139
      %s142 = sphi 0, %s141
      %s156 = sphi 0, %s142
      %s160 = sphi 0, %s160
      %s162 = sphi 0, %s160
      %s163 = sphi 0, %s162
      %s177 = sphi 0, %s163
      %s183 = sphi 0, %s185
      %s186 = sphi 0, %s183
      %s187 = sphi 0, %s186
      %s203 = sphi 0, %s187
    $region4: #{tpu_custom_call.1} parent=1 // loop_header_branch
      %24 = sbr.rel (%p22) target = $region8
    $region5: #{tpu_custom_call.1} parent=1 // loop_body
      %s26 = ssub.s32 %s21, 1
      %s27 = ssub.s32 %s21, 2
      %s28 = sadd.s32 %s21, 1
      %s29 = ssub.s32 %s21, %s28
      %p30 = scmp.eq.s32.totalorder %s29, 0
      %s32 = sadd.s32 %s31, 1
      %s33 = scalar_select %p30, %s31, %s32
      %p36 = pneg %p30
      %p37 = scmp.eq.s32.totalorder %s21, 1
      %p38 = por %p36, %p37
      %p39 = scmp.ne.s32.totalorder %s31, %s34
      %p40 = scmp.eq.s32.totalorder %s21, 0
      %p41 = por %p39, %p40
      %p42 = scmp.ne.s32.totalorder %s31, %s34
      %p43 = scmp.eq.s32.totalorder %s26, 1
      %p44 = por %p42, %p43
      %p45 = scmp.ne.s32.totalorder %s34, %s35
      %p46 = scmp.eq.s32.totalorder %s26, 0
      %p47 = por %p45, %p46
      %p48 = scmp.ne.s32.totalorder %s34, %s35
      %p49 = scmp.eq.s32.totalorder %s27, 1
      %p50 = por %p48, %p49
      %p52 = scmp.ne.s32.totalorder %s35, %s51
      %p53 = scmp.eq.s32.totalorder %s27, 0
      %p54 = por %p52, %p53
      %s56 = sadd.s32 %s55, 1
      %p59 = scmp.eq.s32.totalorder %s21, 1
      %p60 = scmp.ne.s32.totalorder %s55, %s57
      %p61 = scmp.eq.s32.totalorder %s21, 0
      %p62 = por %p60, %p61
      %p63 = scmp.ne.s32.totalorder %s55, %s57
      %p64 = scmp.eq.s32.totalorder %s26, 1
      %p65 = por %p63, %p64
      %p66 = scmp.ne.s32.totalorder %s57, %s58
      %p67 = scmp.eq.s32.totalorder %s26, 0
      %p68 = por %p66, %p67
      %p69 = scmp.ne.s32.totalorder %s57, %s58
      %p70 = scmp.eq.s32.totalorder %s27, 1
      %p71 = por %p69, %p70
      %p73 = scmp.ne.s32.totalorder %s58, %s72
      %p74 = scmp.eq.s32.totalorder %s27, 0
      %p75 = por %p73, %p74
      %s77 = sadd.s32 %s76, 1
      %p80 = scmp.eq.s32.totalorder %s21, 1
      %p81 = scmp.ne.s32.totalorder %s76, %s78
      %p82 = scmp.eq.s32.totalorder %s21, 0
      %p83 = por %p81, %p82
      %p84 = scmp.ne.s32.totalorder %s76, %s78
      %p85 = scmp.eq.s32.totalorder %s26, 1
      %p86 = por %p84, %p85
      %p87 = scmp.ne.s32.totalorder %s78, %s79
      %p88 = scmp.eq.s32.totalorder %s26, 0
      %p89 = por %p87, %p88
      %p90 = scmp.ne.s32.totalorder %s78, %s79
      %p91 = scmp.eq.s32.totalorder %s27, 1
      %p92 = por %p90, %p91
      %p94 = scmp.ne.s32.totalorder %s79, %s93
      %p95 = scmp.eq.s32.totalorder %s27, 0
      %p96 = por %p94, %p95
      %s98 = sadd.s32 %s97, 1
      %p101 = scmp.eq.s32.totalorder %s21, 1
      %p102 = scmp.ne.s32.totalorder %s97, %s99
      %p103 = scmp.eq.s32.totalorder %s21, 0
      %p104 = por %p102, %p103
      %p105 = scmp.ne.s32.totalorder %s97, %s99
      %p106 = scmp.eq.s32.totalorder %s26, 1
      %p107 = por %p105, %p106
      %p108 = scmp.ne.s32.totalorder %s99, %s100
      %p109 = scmp.eq.s32.totalorder %s26, 0
      %p110 = por %p108, %p109
      %p111 = scmp.ne.s32.totalorder %s99, %s100
      %p112 = scmp.eq.s32.totalorder %s27, 1
      %p113 = por %p111, %p112
      %p115 = scmp.ne.s32.totalorder %s100, %s114
      %p116 = scmp.eq.s32.totalorder %s27, 0
      %p117 = por %p115, %p116
      %s119 = sadd.s32 %s118, 1
      %p122 = scmp.eq.s32.totalorder %s21, 1
      %p123 = scmp.ne.s32.totalorder %s118, %s120
      %p124 = scmp.eq.s32.totalorder %s21, 0
      %p125 = por %p123, %p124
      %p126 = scmp.ne.s32.totalorder %s118, %s120
      %p127 = scmp.eq.s32.totalorder %s26, 1
      %p128 = por %p126, %p127
      %p129 = scmp.ne.s32.totalorder %s120, %s121
      %p130 = scmp.eq.s32.totalorder %s26, 0
      %p131 = por %p129, %p130
      %p132 = scmp.ne.s32.totalorder %s120, %s121
      %p133 = scmp.eq.s32.totalorder %s27, 1
      %p134 = por %p132, %p133
      %p136 = scmp.ne.s32.totalorder %s121, %s135
      %p137 = scmp.eq.s32.totalorder %s27, 0
      %p138 = por %p136, %p137
      %s140 = sadd.s32 %s139, 1
      %p143 = scmp.eq.s32.totalorder %s21, 1
      %p144 = scmp.ne.s32.totalorder %s139, %s141
      %p145 = scmp.eq.s32.totalorder %s21, 0
      %p146 = por %p144, %p145
      %p147 = scmp.ne.s32.totalorder %s139, %s141
      %p148 = scmp.eq.s32.totalorder %s26, 1
      %p149 = por %p147, %p148
      %p150 = scmp.ne.s32.totalorder %s141, %s142
      %p151 = scmp.eq.s32.totalorder %s26, 0
      %p152 = por %p150, %p151
      %p153 = scmp.ne.s32.totalorder %s141, %s142
      %p154 = scmp.eq.s32.totalorder %s27, 1
      %p155 = por %p153, %p154
      %p157 = scmp.ne.s32.totalorder %s142, %s156
      %p158 = scmp.eq.s32.totalorder %s27, 0
      %p159 = por %p157, %p158
      %s161 = sadd.s32 %s160, 1
      %p164 = scmp.eq.s32.totalorder %s21, 1
      %p165 = scmp.ne.s32.totalorder %s160, %s162
      %p166 = scmp.eq.s32.totalorder %s21, 0
      %p167 = por %p165, %p166
      %p168 = scmp.ne.s32.totalorder %s160, %s162
      %p169 = scmp.eq.s32.totalorder %s26, 1
      %p170 = por %p168, %p169
      %p171 = scmp.ne.s32.totalorder %s162, %s163
      %p172 = scmp.eq.s32.totalorder %s26, 0
      %p173 = por %p171, %p172
      %p174 = scmp.ne.s32.totalorder %s162, %s163
      %p175 = scmp.eq.s32.totalorder %s27, 1
      %p176 = por %p174, %p175
      %p178 = scmp.ne.s32.totalorder %s163, %s177
      %p179 = scmp.eq.s32.totalorder %s27, 0
      %p180 = por %p178, %p179
      %s181 = ssub.s32 %s21, %s28
      %p182 = scmp.eq.s32.totalorder %s181, 0
      %s184 = sadd.s32 %s183, 1
      %s185 = scalar_select %p182, %s183, %s184
      %p188 = pneg %p182
      %p189 = scmp.eq.s32.totalorder %s21, 1
      %p190 = por %p188, %p189
      %p191 = scmp.ne.s32.totalorder %s183, %s186
      %p192 = scmp.eq.s32.totalorder %s21, 0
      %p193 = por %p191, %p192
      %p194 = scmp.ne.s32.totalorder %s183, %s186
      %p195 = scmp.eq.s32.totalorder %s26, 1
      %p196 = por %p194, %p195
      %p197 = scmp.ne.s32.totalorder %s186, %s187
      %p198 = scmp.eq.s32.totalorder %s26, 0
      %p199 = por %p197, %p198
      %p200 = scmp.ne.s32.totalorder %s186, %s187
      %p201 = scmp.eq.s32.totalorder %s27, 1
      %p202 = por %p200, %p201
      %p204 = scmp.ne.s32.totalorder %s187, %s203
      %p205 = scmp.eq.s32.totalorder %s27, 0
      %p206 = por %p204, %p205
      %p207 = scmp.le.s32.totalorder 1, %s21
      %p208 = scmp.lt.s32.totalorder %s21, 3
      %p209 = pnand %p207, %p208
      %p210 = pneg %p209
      // Predicated region
      $region9: #{tpu_custom_call.1} parent=5 // pred_check
        _
      $region10: #{tpu_custom_call.1} parent=5 // pred_check_branch
        %212 = sbr.rel (%p209) target = $region12
      $region11: #{tpu_custom_call.1} parent=5 // pred_region
        %s213 = ssub.s32 %s21, 1
        // Predicated region
        $region13: #{tpu_custom_call.1} parent=11 // pred_check
          %p214 = pneg %p68
        $region14: #{tpu_custom_call.1} parent=11 // pred_check_branch
          %216 = sbr.rel (%p214) target = $region16
        $region15: #{tpu_custom_call.1} parent=11 // pred_region
          %s218 = ssub.s32 4096, 4096
          %219 = vsyncadd [#allocation6], %s218
          %s220 = sshll.u32 [#allocation5], 4
          %s221 = int_to_ptr.vmem [resolvable:$true] %s220
          %226 = dma.hbm_to_vmem [thread:$0]  %s1, 4096, %s221, [#allocation6], 256, 256, 16
        $region16: #{tpu_custom_call.1} parent=11 // pred_fallthru
          _
        // Predicated region
        $region17: #{tpu_custom_call.1} parent=11 // pred_check
          %p227 = pneg %p89
        $region18: #{tpu_custom_call.1} parent=11 // pred_check_branch
          %229 = sbr.rel (%p227) target = $region20
        $region19: #{tpu_custom_call.1} parent=11 // pred_region
          %s231 = ssub.s32 64, 64
          %232 = vsyncadd [#allocation6], %s231
          %s234 = sshll.u32 [#allocation7], 4
          %s235 = int_to_ptr.vmem [resolvable:$true] %s234
          %237 = dma.hbm_to_vmem [thread:$0]  %s2, 64, %s235, [#allocation6]
        $region20: #{tpu_custom_call.1} parent=11 // pred_fallthru
          _
        // Predicated region
        $region21: #{tpu_custom_call.1} parent=11 // pred_check
          %p238 = pneg %p110
        $region22: #{tpu_custom_call.1} parent=11 // pred_check_branch
          %240 = sbr.rel (%p238) target = $region24
        $region23: #{tpu_custom_call.1} parent=11 // pred_region
          %s242 = ssub.s32 8192, 8192
          %243 = vsyncadd [#allocation9], %s242
          %s244 = sshll.u32 [#allocation8], 4
          %s245 = int_to_ptr.vmem [resolvable:$true] %s244
          %250 = dma.hbm_to_vmem [thread:$0]  %s3, 8192, %s245, [#allocation9], 128, 128, 8
        $region24: #{tpu_custom_call.1} parent=11 // pred_fallthru
          _
        // Predicated region
        $region25: #{tpu_custom_call.1} parent=11 // pred_check
          %p251 = pneg %p131
        $region26: #{tpu_custom_call.1} parent=11 // pred_check_branch
          %253 = sbr.rel (%p251) target = $region28
        $region27: #{tpu_custom_call.1} parent=11 // pred_region
          _
        $region28: #{tpu_custom_call.1} parent=11 // pred_fallthru
          _
        // Predicated region
        $region29: #{tpu_custom_call.1} parent=11 // pred_check
          %p254 = pneg %p152
        $region30: #{tpu_custom_call.1} parent=11 // pred_check_branch
          %256 = sbr.rel (%p254) target = $region32
        $region31: #{tpu_custom_call.1} parent=11 // pred_region
          %s258 = ssub.s32 2048, 2048
          %259 = vsyncadd [#allocation9], %s258
          %s260 = sshll.u32 [#allocation10], 4
          %s261 = int_to_ptr.vmem [resolvable:$true] %s260
          %266 = dma.hbm_to_vmem [thread:$0]  %s5, 2048, %s261, [#allocation9], 64, 64, 4
        $region32: #{tpu_custom_call.1} parent=11 // pred_fallthru
          _
        // Predicated region
        $region33: #{tpu_custom_call.1} parent=11 // pred_check
          %p267 = pneg %p173
        $region34: #{tpu_custom_call.1} parent=11 // pred_check_branch
          %269 = sbr.rel (%p267) target = $region36
        $region35: #{tpu_custom_call.1} parent=11 // pred_region
          _
        $region36: #{tpu_custom_call.1} parent=11 // pred_fallthru
          _
      $region12: #{tpu_custom_call.1} parent=5 // pred_fallthru
        _
      %p270 = scmp.lt.s32.totalorder %s21, 2
      // Predicated region
      $region37: #{tpu_custom_call.1} parent=5 // pred_check
        %p271 = pneg %p270
      $region38: #{tpu_custom_call.1} parent=5 // pred_check_branch
        %273 = sbr.rel (%p271) target = $region40
      $region39: #{tpu_custom_call.1} parent=5 // pred_region
        // Predicated region
        $region41: #{tpu_custom_call.1} parent=39 // pred_check
          %p274 = pneg %p41
        $region42: #{tpu_custom_call.1} parent=39 // pred_check_branch
          %276 = sbr.rel (%p274) target = $region44
        $region43: #{tpu_custom_call.1} parent=39 // pred_region
          %s277 = sand.u32 %s31, 1
          %s278 = scalar_lea.sflag [#allocation3], %s277
          %s279 = sand.u32 %s31, 1
          %s280 = smul.addr %s279, 128
          %s281 = scalar_lea.vmem [#allocation2], %s280
          %s282 = smul.u32 16, %s21
          %s284 = ssub.s32 2048, 2048
          %285 = vsyncadd %s278, %s284
          %s286 = smul.addr %s282, 128
          %s287 = scalar_lea.hbm %s0, %s286
          %s288 = sshll.u32 %s281, 4
          %s289 = int_to_ptr.vmem [resolvable:$true] %s288
          %294 = dma.hbm_to_vmem [thread:$0]  %s287, 2048, %s289, %s278, 128, 128, 8
        $region44: #{tpu_custom_call.1} parent=39 // pred_fallthru
          _
      $region40: #{tpu_custom_call.1} parent=5 // pred_fallthru
        _
      %p295 = scmp.le.s32.totalorder 1, %s21
      %p296 = scmp.lt.s32.totalorder %s21, 3
      %p297 = pnand %p295, %p296
      %p298 = pneg %p297
      // Predicated region
      $region45: #{tpu_custom_call.1} parent=5 // pred_check
        _
      $region46: #{tpu_custom_call.1} parent=5 // pred_check_branch
        %300 = sbr.rel (%p297) target = $region48
      $region47: #{tpu_custom_call.1} parent=5 // pred_region
        %s301 = ssub.s32 %s21, 1
        %s302 = sand.u32 %s34, 1
        %s303 = scalar_lea.sflag [#allocation3], %s302
        %s304 = sand.u32 %s34, 1
        %s305 = smul.addr %s304, 128
        %s306 = scalar_lea.vmem [#allocation2], %s305
        // Predicated region
        $region49: #{tpu_custom_call.1} parent=47 // pred_check
          %p307 = pneg %p47
        $region50: #{tpu_custom_call.1} parent=47 // pred_check_branch
          %309 = sbr.rel (%p307) target = $region52
        $region51: #{tpu_custom_call.1} parent=47 // pred_region
          %310 = dma.done %s303, 2048
        $region52: #{tpu_custom_call.1} parent=47 // pred_fallthru
          _
        // Predicated region
        $region53: #{tpu_custom_call.1} parent=47 // pred_check
          %p311 = pneg %p68
        $region54: #{tpu_custom_call.1} parent=47 // pred_check_branch
          %313 = sbr.rel (%p311) target = $region56
        $region55: #{tpu_custom_call.1} parent=47 // pred_region
          %314 = dma.done [#allocation6], 4096
        $region56: #{tpu_custom_call.1} parent=47 // pred_fallthru
          _
        // Predicated region
        $region57: #{tpu_custom_call.1} parent=47 // pred_check
          %p315 = pneg %p89
        $region58: #{tpu_custom_call.1} parent=47 // pred_check_branch
          %317 = sbr.rel (%p315) target = $region60
        $region59: #{tpu_custom_call.1} parent=47 // pred_region
          %318 = dma.done [#allocation6], 64
        $region60: #{tpu_custom_call.1} parent=47 // pred_fallthru
          _
        // Predicated region
        $region61: #{tpu_custom_call.1} parent=47 // pred_check
          %p319 = pneg %p110
        $region62: #{tpu_custom_call.1} parent=47 // pred_check_branch
          %321 = sbr.rel (%p319) target = $region64
        $region63: #{tpu_custom_call.1} parent=47 // pred_region
          %322 = dma.done [#allocation9], 8192
        $region64: #{tpu_custom_call.1} parent=47 // pred_fallthru
          _
        // Predicated region
        $region65: #{tpu_custom_call.1} parent=47 // pred_check
          %p323 = pneg %p152
        $region66: #{tpu_custom_call.1} parent=47 // pred_check_branch
          %325 = sbr.rel (%p323) target = $region68
        $region67: #{tpu_custom_call.1} parent=47 // pred_region
          %326 = dma.done [#allocation9], 2048
        $region68: #{tpu_custom_call.1} parent=47 // pred_fallthru
          _
        %s327 = sand.u32 %s34, 1
        %s328 = scalar_lea.sflag [#allocation3], %s327
        %s329 = sand.u32 %s34, 1
        %s330 = smul.addr %s329, 128
        %s331 = scalar_lea.vmem [#allocation2], %s330
        %p332 = pneg %p47
        %p333 = pneg %p44
        %p334 = pneg %p68
        %p335 = pneg %p65
        %p336 = pneg %p89
        %p337 = pneg %p86
        %p338 = pneg %p110
        %p339 = pneg %p107
        %p340 = pneg %p131
        %p341 = pneg %p128
        %p342 = pneg %p152
        %p343 = pneg %p149
        %p344 = pneg %p173
        %p345 = pneg %p170
        %p346 = pneg %p199
        %p347 = pneg %p196
        %s348 = sand.u32 %s186, 1
        %s349 = scalar_lea.sflag [#allocation4], %s348
        %s350 = sand.u32 %s186, 1
        %s351 = smul.addr %s350, 64
        %s352 = scalar_lea.vmem [#allocation11], %s351
        %s353 = smul.u32 16, %s26
        %s354 = smul.u32 16, %s26
        %v356 = vld [vmem:[%s306] sm:$0xff]
        %v357 = vld [vmem:[%s306 + $0x8] sm:$0xff]
        %v358 = vld [vmem:[%s306 + $0x10] sm:$0xff]
        %v359 = vld [vmem:[%s306 + $0x18] sm:$0xff]
        %v360 = vld [vmem:[%s306 + $0x20] sm:$0xff]
        %v361 = vld [vmem:[%s306 + $0x28] sm:$0xff]
        %v362 = vld [vmem:[%s306 + $0x30] sm:$0xff]
        %v363 = vld [vmem:[%s306 + $0x38] sm:$0xff]
        %v364 = vld [vmem:[%s306 + $0x40] sm:$0xff]
        %v365 = vld [vmem:[%s306 + $0x48] sm:$0xff]
        %v366 = vld [vmem:[%s306 + $0x50] sm:$0xff]
        %v367 = vld [vmem:[%s306 + $0x58] sm:$0xff]
        %v368 = vld [vmem:[%s306 + $0x60] sm:$0xff]
        %v369 = vld [vmem:[%s306 + $0x68] sm:$0xff]
        %v370 = vld [vmem:[%s306 + $0x70] sm:$0xff]
        %v371 = vld [vmem:[%s306 + $0x78] sm:$0xff]
        %v372 = vpack.c.bf16 %v357, %v356
        %v373 = vpack.c.bf16 %v359, %v358
        %v374 = vpack.c.bf16 %v361, %v360
        %v375 = vpack.c.bf16 %v363, %v362
        %v376 = vpack.c.bf16 %v365, %v364
        %v377 = vpack.c.bf16 %v367, %v366
        %v378 = vpack.c.bf16 %v369, %v368
        %v379 = vpack.c.bf16 %v371, %v370
        %v380 = vld [vmem:[#allocation5] sm:$0xff]
        %v381 = vld [vmem:[#allocation5 + $0x8] sm:$0xff]
        %v382 = vld [vmem:[#allocation5 + $0x10] sm:$0xff]
        %v383 = vld [vmem:[#allocation5 + $0x18] sm:$0xff]
        %v384 = vld [vmem:[#allocation5 + $0x20] sm:$0xff]
        %v385 = vld [vmem:[#allocation5 + $0x28] sm:$0xff]
        %v386 = vld [vmem:[#allocation5 + $0x30] sm:$0xff]
        %v387 = vld [vmem:[#allocation5 + $0x38] sm:$0xff]
        %v388 = vld [vmem:[#allocation5 + $0x40] sm:$0xff]
        %v389 = vld [vmem:[#allocation5 + $0x48] sm:$0xff]
        %v390 = vld [vmem:[#allocation5 + $0x50] sm:$0xff]
        %v391 = vld [vmem:[#allocation5 + $0x58] sm:$0xff]
        %v392 = vld [vmem:[#allocation5 + $0x60] sm:$0xff]
        %v393 = vld [vmem:[#allocation5 + $0x68] sm:$0xff]
        %v394 = vld [vmem:[#allocation5 + $0x70] sm:$0xff]
        %v395 = vld [vmem:[#allocation5 + $0x78] sm:$0xff]
        %v396 = vld [vmem:[#allocation5 + $0x80] sm:$0xff]
        %v397 = vld [vmem:[#allocation5 + $0x88] sm:$0xff]
        %v398 = vld [vmem:[#allocation5 + $0x90] sm:$0xff]
        %v399 = vld [vmem:[#allocation5 + $0x98] sm:$0xff]
        %v400 = vld [vmem:[#allocation5 + $0xa0] sm:$0xff]
        %v401 = vld [vmem:[#allocation5 + $0xa8] sm:$0xff]
        %v402 = vld [vmem:[#allocation5 + $0xb0] sm:$0xff]
        %v403 = vld [vmem:[#allocation5 + $0xb8] sm:$0xff]
        %v404 = vld [vmem:[#allocation5 + $0xc0] sm:$0xff]
        %v405 = vld [vmem:[#allocation5 + $0xc8] sm:$0xff]
        %v406 = vld [vmem:[#allocation5 + $0xd0] sm:$0xff]
        %v407 = vld [vmem:[#allocation5 + $0xd8] sm:$0xff]
        %v408 = vld [vmem:[#allocation5 + $0xe0] sm:$0xff]
        %v409 = vld [vmem:[#allocation5 + $0xe8] sm:$0xff]
        %v410 = vld [vmem:[#allocation5 + $0xf0] sm:$0xff]
        %v411 = vld [vmem:[#allocation5 + $0xf8] sm:$0xff]
        %v412 = vld [vmem:[#allocation7] sm:$0xf]
        %v414 = vlaneseq
        %v415 = vshrl.u32 %v414, 7
        %v416 = vsub.s32 0, %v415
        %v417 = vrot.slane %v412, %v416
        %v418 = vlaneseq
        %v419 = vshrl.u32 %v418, 7
        %v420 = vsub.s32 1, %v419
        %v421 = vrot.slane %v412, %v420
        %v422 = vlaneseq
        %v423 = vshrl.u32 %v422, 7
        %v424 = vsub.s32 2, %v423
        %v425 = vrot.slane %v412, %v424
        %v426 = vlaneseq
        %v427 = vshrl.u32 %v426, 7
        %v428 = vsub.s32 3, %v427
        %v429 = vrot.slane %v412, %v428
        %v466 = vunpack.c.l.b16 %v380
        %v467 = vunpack.c.h.b16 %v380
        %v468 = vunpack.c.l.b16 %v381
        %v469 = vunpack.c.h.b16 %v381
        %v470 = vunpack.c.l.b16 %v382
        %v471 = vunpack.c.h.b16 %v382
        %v472 = vunpack.c.l.b16 %v383
        %v473 = vunpack.c.h.b16 %v383
        %v474 = vunpack.c.l.b16 %v384
        %v475 = vunpack.c.h.b16 %v384
        %v476 = vunpack.c.l.b16 %v385
        %v477 = vunpack.c.h.b16 %v385
        %v478 = vunpack.c.l.b16 %v386
        %v479 = vunpack.c.h.b16 %v386
        %v480 = vunpack.c.l.b16 %v387
        %v481 = vunpack.c.h.b16 %v387
        %v482 = vunpack.c.l.b16 %v388
        %v483 = vunpack.c.h.b16 %v388
        %v484 = vunpack.c.l.b16 %v389
        %v485 = vunpack.c.h.b16 %v389
        %v486 = vunpack.c.l.b16 %v390
        %v487 = vunpack.c.h.b16 %v390
        %v488 = vunpack.c.l.b16 %v391
        %v489 = vunpack.c.h.b16 %v391
        %v490 = vunpack.c.l.b16 %v392
        %v491 = vunpack.c.h.b16 %v392
        %v492 = vunpack.c.l.b16 %v393
        %v493 = vunpack.c.h.b16 %v393
        %v494 = vunpack.c.l.b16 %v394
        %v495 = vunpack.c.h.b16 %v394
        %v496 = vunpack.c.l.b16 %v395
        %v497 = vunpack.c.h.b16 %v395
        %v498 = vunpack.c.l.b16 %v396
        %v499 = vunpack.c.h.b16 %v396
        %v500 = vunpack.c.l.b16 %v397
        %v501 = vunpack.c.h.b16 %v397
        %v502 = vunpack.c.l.b16 %v398
        %v503 = vunpack.c.h.b16 %v398
        %v504 = vunpack.c.l.b16 %v399
        %v505 = vunpack.c.h.b16 %v399
        %v506 = vunpack.c.l.b16 %v400
        %v507 = vunpack.c.h.b16 %v400
        %v508 = vunpack.c.l.b16 %v401
        %v509 = vunpack.c.h.b16 %v401
        %v510 = vunpack.c.l.b16 %v402
        %v511 = vunpack.c.h.b16 %v402
        %v512 = vunpack.c.l.b16 %v403
        %v513 = vunpack.c.h.b16 %v403
        %v514 = vunpack.c.l.b16 %v404
        %v515 = vunpack.c.h.b16 %v404
        %v516 = vunpack.c.l.b16 %v405
        %v517 = vunpack.c.h.b16 %v405
        %v518 = vunpack.c.l.b16 %v406
        %v519 = vunpack.c.h.b16 %v406
        %v520 = vunpack.c.l.b16 %v407
        %v521 = vunpack.c.h.b16 %v407
        %v522 = vunpack.c.l.b16 %v408
        %v523 = vunpack.c.h.b16 %v408
        %v524 = vunpack.c.l.b16 %v409
        %v525 = vunpack.c.h.b16 %v409
        %v526 = vunpack.c.l.b16 %v410
        %v527 = vunpack.c.h.b16 %v410
        %v528 = vunpack.c.l.b16 %v411
        %v529 = vunpack.c.h.b16 %v411
        %v530 = vpack.c.b16 %v470, %v466
        %v531 = vpack.c.b16 %v471, %v467
        %v532 = vpack.c.b16 %v472, %v468
        %v533 = vpack.c.b16 %v473, %v469
        %v534 = vpack.c.b16 %v478, %v474
        %v535 = vpack.c.b16 %v479, %v475
        %v536 = vpack.c.b16 %v480, %v476
        %v537 = vpack.c.b16 %v481, %v477
        %v538 = vpack.c.b16 %v486, %v482
        %v539 = vpack.c.b16 %v487, %v483
        %v540 = vpack.c.b16 %v488, %v484
        %v541 = vpack.c.b16 %v489, %v485
        %v542 = vpack.c.b16 %v494, %v490
        %v543 = vpack.c.b16 %v495, %v491
        %v544 = vpack.c.b16 %v496, %v492
        %v545 = vpack.c.b16 %v497, %v493
        %v546 = vpack.c.b16 %v502, %v498
        %v547 = vpack.c.b16 %v503, %v499
        %v548 = vpack.c.b16 %v504, %v500
        %v549 = vpack.c.b16 %v505, %v501
        %v550 = vpack.c.b16 %v510, %v506
        %v551 = vpack.c.b16 %v511, %v507
        %v552 = vpack.c.b16 %v512, %v508
        %v553 = vpack.c.b16 %v513, %v509
        %v554 = vpack.c.b16 %v518, %v514
        %v555 = vpack.c.b16 %v519, %v515
        %v556 = vpack.c.b16 %v520, %v516
        %v557 = vpack.c.b16 %v521, %v517
        %v558 = vpack.c.b16 %v526, %v522
        %v559 = vpack.c.b16 %v527, %v523
        %v560 = vpack.c.b16 %v528, %v524
        %v561 = vpack.c.b16 %v529, %v525
        %594 = vmatprep.subr.bf16.mxu0 %v559
        %595 = vmatpush1.bf16.msra.mxu0 %v558
        %596 = vmatprep.subr.bf16.mxu0 %v555
        %597 = vmatpush1.bf16.msra.mxu0 %v554
        %598 = vmatprep.subr.bf16.mxu0 %v551
        %599 = vmatpush1.bf16.msra.mxu0 %v550
        %600 = vmatprep.subr.bf16.mxu0 %v547
        %601 = vmatpush1.bf16.msra.mxu0 %v546
        %602 = vmatprep.subr.bf16.mxu0 %v543
        %603 = vmatpush1.bf16.msra.mxu0 %v542
        %604 = vmatprep.subr.bf16.mxu0 %v539
        %605 = vmatpush1.bf16.msra.mxu0 %v538
        %606 = vmatprep.subr.bf16.mxu0 %v535
        %607 = vmatpush1.bf16.msra.mxu0 %v534
        %608 = vmatprep.subr.bf16.mxu0 %v531
        %609 = vmatpush1.bf16.msra.mxu0 %v530
        %610 = vmatprep.subr.bf16.mxu0 0
        %611 = vmatpush2.bf16.msra.mxu0 0
        %612 = vmatprep.subr.bf16.mxu0 0
        %613 = vmatpush2.bf16.msra.mxu0 0
        %614 = vmatprep.subr.bf16.mxu0 0
        %615 = vmatpush2.bf16.msra.mxu0 0
        %616 = vmatprep.subr.bf16.mxu0 0
        %617 = vmatpush2.bf16.msra.mxu0 0
        %618 = vmatprep.subr.bf16.mxu0 0
        %619 = vmatpush2.bf16.msra.mxu0 0
        %620 = vmatprep.subr.bf16.mxu0 0
        %621 = vmatpush2.bf16.msra.mxu0 0
        %622 = vmatprep.subr.bf16.mxu0 0
        %623 = vmatpush2.bf16.msra.mxu0 0
        %624 = vmatprep.subr.bf16.mxu0 0
        %625 = vmatpush2.bf16.msra.mxu0 0
        %626 = vmatprep.mubr.bf16.mxu0 0
        %627 = vmatmul.mubr.bf16.gmra.mxu0 %v372
        %v628 = vpop.f32.mrf.mxu0
        %v629 = vadd.f32 %v417, %v628
        %v630 = vpop.f32.mrf.mxu0
        %v631 = vadd.f32 %v421, %v630
        %v632 = vpop.f32.mrf.mxu0
        %v633 = vadd.f32 %v417, %v632
        %v634 = vpop.f32.mrf.mxu0
        %v635 = vadd.f32 %v421, %v634
        %636 = vmatprep.mubr.bf16.mxu0 0
        %637 = vmatmul.mubr.bf16.gmra.mxu0 %v373
        %v638 = vpop.f32.mrf.mxu0
        %v639 = vadd.f32 %v417, %v638
        %v640 = vpop.f32.mrf.mxu0
        %v641 = vadd.f32 %v421, %v640
        %v642 = vpop.f32.mrf.mxu0
        %v643 = vadd.f32 %v417, %v642
        %v644 = vpop.f32.mrf.mxu0
        %v645 = vadd.f32 %v421, %v644
        %646 = vmatprep.mubr.bf16.mxu0 0
        %647 = vmatmul.mubr.bf16.gmra.mxu0 %v374
        %v648 = vpop.f32.mrf.mxu0
        %v649 = vadd.f32 %v417, %v648
        %v650 = vpop.f32.mrf.mxu0
        %v651 = vadd.f32 %v421, %v650
        %v652 = vpop.f32.mrf.mxu0
        %v653 = vadd.f32 %v417, %v652
        %v654 = vpop.f32.mrf.mxu0
        %v655 = vadd.f32 %v421, %v654
        %656 = vmatprep.mubr.bf16.mxu0 0
        %657 = vmatmul.mubr.bf16.gmra.mxu0 %v375
        %v658 = vpop.f32.mrf.mxu0
        %v659 = vadd.f32 %v417, %v658
        %v660 = vpop.f32.mrf.mxu0
        %v661 = vadd.f32 %v421, %v660
        %v662 = vpop.f32.mrf.mxu0
        %v663 = vadd.f32 %v417, %v662
        %v664 = vpop.f32.mrf.mxu0
        %v665 = vadd.f32 %v421, %v664
        %666 = vmatprep.mubr.bf16.mxu0 0
        %667 = vmatmul.mubr.bf16.gmra.mxu0 %v376
        %v668 = vpop.f32.mrf.mxu0
        %v669 = vadd.f32 %v417, %v668
        %v670 = vpop.f32.mrf.mxu0
        %v671 = vadd.f32 %v421, %v670
        %v672 = vpop.f32.mrf.mxu0
        %v673 = vadd.f32 %v417, %v672
        %v674 = vpop.f32.mrf.mxu0
        %v675 = vadd.f32 %v421, %v674
        %676 = vmatprep.mubr.bf16.mxu0 0
        %677 = vmatmul.mubr.bf16.gmra.mxu0 %v377
        %v678 = vpop.f32.mrf.mxu0
        %v679 = vadd.f32 %v417, %v678
        %v680 = vpop.f32.mrf.mxu0
        %v681 = vadd.f32 %v421, %v680
        %v682 = vpop.f32.mrf.mxu0
        %v683 = vadd.f32 %v417, %v682
        %v684 = vpop.f32.mrf.mxu0
        %v685 = vadd.f32 %v421, %v684
        %686 = vmatprep.mubr.bf16.mxu0 0
        %687 = vmatmul.mubr.bf16.gmra.mxu0 %v378
        %v688 = vpop.f32.mrf.mxu0
        %v689 = vadd.f32 %v417, %v688
        %v690 = vpop.f32.mrf.mxu0
        %v691 = vadd.f32 %v421, %v690
        %v692 = vpop.f32.mrf.mxu0
        %v693 = vadd.f32 %v417, %v692
        %v694 = vpop.f32.mrf.mxu0
        %v695 = vadd.f32 %v421, %v694
        %696 = vmatprep.mubr.bf16.mxu0 0
        %697 = vmatmul.mubr.bf16.gmra.mxu0 %v379
        %v698 = vpop.f32.mrf.mxu0
        %v699 = vadd.f32 %v417, %v698
        %v700 = vpop.f32.mrf.mxu0
        %v701 = vadd.f32 %v421, %v700
        %v702 = vpop.f32.mrf.mxu0
        %v703 = vadd.f32 %v417, %v702
        %v704 = vpop.f32.mrf.mxu0
        %v705 = vadd.f32 %v421, %v704
        %706 = vdwg.mxu0
        %707 = vmatprep.subr.bf16.mxu0 %v561
        %708 = vmatpush1.bf16.msra.mxu0 %v560
        %709 = vmatprep.subr.bf16.mxu0 %v557
        %710 = vmatpush1.bf16.msra.mxu0 %v556
        %711 = vmatprep.subr.bf16.mxu0 %v553
        %712 = vmatpush1.bf16.msra.mxu0 %v552
        %713 = vmatprep.subr.bf16.mxu0 %v549
        %714 = vmatpush1.bf16.msra.mxu0 %v548
        %715 = vmatprep.subr.bf16.mxu0 %v545
        %716 = vmatpush1.bf16.msra.mxu0 %v544
        %717 = vmatprep.subr.bf16.mxu0 %v541
        %718 = vmatpush1.bf16.msra.mxu0 %v540
        %719 = vmatprep.subr.bf16.mxu0 %v537
        %720 = vmatpush1.bf16.msra.mxu0 %v536
        %721 = vmatprep.subr.bf16.mxu0 %v533
        %722 = vmatpush1.bf16.msra.mxu0 %v532
        %723 = vmatprep.subr.bf16.mxu0 0
        %724 = vmatpush2.bf16.msra.mxu0 0
        %725 = vmatprep.subr.bf16.mxu0 0
        %726 = vmatpush2.bf16.msra.mxu0 0
        %727 = vmatprep.subr.bf16.mxu0 0
        %728 = vmatpush2.bf16.msra.mxu0 0
        %729 = vmatprep.subr.bf16.mxu0 0
        %730 = vmatpush2.bf16.msra.mxu0 0
        %731 = vmatprep.subr.bf16.mxu0 0
        %732 = vmatpush2.bf16.msra.mxu0 0
        %733 = vmatprep.subr.bf16.mxu0 0
        %734 = vmatpush2.bf16.msra.mxu0 0
        %735 = vmatprep.subr.bf16.mxu0 0
        %736 = vmatpush2.bf16.msra.mxu0 0
        %737 = vmatprep.subr.bf16.mxu0 0
        %738 = vmatpush2.bf16.msra.mxu0 0
        %739 = vmatprep.mubr.bf16.mxu0 0
        %740 = vmatmul.mubr.bf16.gmra.mxu0 %v372
        %v741 = vpop.f32.mrf.mxu0
        %v742 = vadd.f32 %v425, %v741
        %v743 = vpop.f32.mrf.mxu0
        %v744 = vadd.f32 %v429, %v743
        %v745 = vpop.f32.mrf.mxu0
        %v746 = vadd.f32 %v425, %v745
        %v747 = vpop.f32.mrf.mxu0
        %v748 = vadd.f32 %v429, %v747
        %749 = vmatprep.mubr.bf16.mxu0 0
        %750 = vmatmul.mubr.bf16.gmra.mxu0 %v373
        %v751 = vpop.f32.mrf.mxu0
        %v752 = vadd.f32 %v425, %v751
        %v753 = vpop.f32.mrf.mxu0
        %v754 = vadd.f32 %v429, %v753
        %v755 = vpop.f32.mrf.mxu0
        %v756 = vadd.f32 %v425, %v755
        %v757 = vpop.f32.mrf.mxu0
        %v758 = vadd.f32 %v429, %v757
        %759 = vmatprep.mubr.bf16.mxu0 0
        %760 = vmatmul.mubr.bf16.gmra.mxu0 %v374
        %v761 = vpop.f32.mrf.mxu0
        %v762 = vadd.f32 %v425, %v761
        %v763 = vpop.f32.mrf.mxu0
        %v764 = vadd.f32 %v429, %v763
        %v765 = vpop.f32.mrf.mxu0
        %v766 = vadd.f32 %v425, %v765
        %v767 = vpop.f32.mrf.mxu0
        %v768 = vadd.f32 %v429, %v767
        %769 = vmatprep.mubr.bf16.mxu0 0
        %770 = vmatmul.mubr.bf16.gmra.mxu0 %v375
        %v771 = vpop.f32.mrf.mxu0
        %v772 = vadd.f32 %v425, %v771
        %v773 = vpop.f32.mrf.mxu0
        %v774 = vadd.f32 %v429, %v773
        %v775 = vpop.f32.mrf.mxu0
        %v776 = vadd.f32 %v425, %v775
        %v777 = vpop.f32.mrf.mxu0
        %v778 = vadd.f32 %v429, %v777
        %779 = vmatprep.mubr.bf16.mxu0 0
        %780 = vmatmul.mubr.bf16.gmra.mxu0 %v376
        %v781 = vpop.f32.mrf.mxu0
        %v782 = vadd.f32 %v425, %v781
        %v783 = vpop.f32.mrf.mxu0
        %v784 = vadd.f32 %v429, %v783
        %v785 = vpop.f32.mrf.mxu0
        %v786 = vadd.f32 %v425, %v785
        %v787 = vpop.f32.mrf.mxu0
        %v788 = vadd.f32 %v429, %v787
        %789 = vmatprep.mubr.bf16.mxu0 0
        %790 = vmatmul.mubr.bf16.gmra.mxu0 %v377
        %v791 = vpop.f32.mrf.mxu0
        %v792 = vadd.f32 %v425, %v791
        %v793 = vpop.f32.mrf.mxu0
        %v794 = vadd.f32 %v429, %v793
        %v795 = vpop.f32.mrf.mxu0
        %v796 = vadd.f32 %v425, %v795
        %v797 = vpop.f32.mrf.mxu0
        %v798 = vadd.f32 %v429, %v797
        %799 = vmatprep.mubr.bf16.mxu0 0
        %800 = vmatmul.mubr.bf16.gmra.mxu0 %v378
        %v801 = vpop.f32.mrf.mxu0
        %v802 = vadd.f32 %v425, %v801
        %v803 = vpop.f32.mrf.mxu0
        %v804 = vadd.f32 %v429, %v803
        %v805 = vpop.f32.mrf.mxu0
        %v806 = vadd.f32 %v425, %v805
        %v807 = vpop.f32.mrf.mxu0
        %v808 = vadd.f32 %v429, %v807
        %809 = vmatprep.mubr.bf16.mxu0 0
        %810 = vmatmul.mubr.bf16.gmra.mxu0 %v379
        %v811 = vpop.f32.mrf.mxu0
        %v812 = vadd.f32 %v425, %v811
        %v813 = vpop.f32.mrf.mxu0
        %v814 = vadd.f32 %v429, %v813
        %v815 = vpop.f32.mrf.mxu0
        %v816 = vadd.f32 %v425, %v815
        %v817 = vpop.f32.mrf.mxu0
        %v818 = vadd.f32 %v429, %v817
        %819 = vdwg.mxu0
        %v820 = vmax.f32 %v629, 0.0
        %v821 = vmax.f32 %v631, 0.0
        %v822 = vmax.f32 %v742, 0.0
        %v823 = vmax.f32 %v744, 0.0
        %v824 = vmax.f32 %v633, 0.0
        %v825 = vmax.f32 %v635, 0.0
        %v826 = vmax.f32 %v746, 0.0
        %v827 = vmax.f32 %v748, 0.0
        %v828 = vmax.f32 %v639, 0.0
        %v829 = vmax.f32 %v641, 0.0
        %v830 = vmax.f32 %v752, 0.0
        %v831 = vmax.f32 %v754, 0.0
        %v832 = vmax.f32 %v643, 0.0
        %v833 = vmax.f32 %v645, 0.0
        %v834 = vmax.f32 %v756, 0.0
        %v835 = vmax.f32 %v758, 0.0
        %v836 = vmax.f32 %v649, 0.0
        %v837 = vmax.f32 %v651, 0.0
        %v838 = vmax.f32 %v762, 0.0
        %v839 = vmax.f32 %v764, 0.0
        %v840 = vmax.f32 %v653, 0.0
        %v841 = vmax.f32 %v655, 0.0
        %v842 = vmax.f32 %v766, 0.0
        %v843 = vmax.f32 %v768, 0.0
        %v844 = vmax.f32 %v659, 0.0
        %v845 = vmax.f32 %v661, 0.0
        %v846 = vmax.f32 %v772, 0.0
        %v847 = vmax.f32 %v774, 0.0
        %v848 = vmax.f32 %v663, 0.0
        %v849 = vmax.f32 %v665, 0.0
        %v850 = vmax.f32 %v776, 0.0
        %v851 = vmax.f32 %v778, 0.0
        %v852 = vmax.f32 %v669, 0.0
        %v853 = vmax.f32 %v671, 0.0
        %v854 = vmax.f32 %v782, 0.0
        %v855 = vmax.f32 %v784, 0.0
        %v856 = vmax.f32 %v673, 0.0
        %v857 = vmax.f32 %v675, 0.0
        %v858 = vmax.f32 %v786, 0.0
        %v859 = vmax.f32 %v788, 0.0
        %v860 = vmax.f32 %v679, 0.0
        %v861 = vmax.f32 %v681, 0.0
        %v862 = vmax.f32 %v792, 0.0
        %v863 = vmax.f32 %v794, 0.0
        %v864 = vmax.f32 %v683, 0.0
        %v865 = vmax.f32 %v685, 0.0
        %v866 = vmax.f32 %v796, 0.0
        %v867 = vmax.f32 %v798, 0.0
        %v868 = vmax.f32 %v689, 0.0
        %v869 = vmax.f32 %v691, 0.0
        %v870 = vmax.f32 %v802, 0.0
        %v871 = vmax.f32 %v804, 0.0
        %v872 = vmax.f32 %v693, 0.0
        %v873 = vmax.f32 %v695, 0.0
        %v874 = vmax.f32 %v806, 0.0
        %v875 = vmax.f32 %v808, 0.0
        %v876 = vmax.f32 %v699, 0.0
        %v877 = vmax.f32 %v701, 0.0
        %v878 = vmax.f32 %v812, 0.0
        %v879 = vmax.f32 %v814, 0.0
        %v880 = vmax.f32 %v703, 0.0
        %v881 = vmax.f32 %v705, 0.0
        %v882 = vmax.f32 %v816, 0.0
        %v883 = vmax.f32 %v818, 0.0
        %v884 = vpack.c.bf16 %v824, %v820
        %v885 = vpack.c.bf16 %v825, %v821
        %v886 = vpack.c.bf16 %v826, %v822
        %v887 = vpack.c.bf16 %v827, %v823
        %v888 = vpack.c.bf16 %v832, %v828
        %v889 = vpack.c.bf16 %v833, %v829
        %v890 = vpack.c.bf16 %v834, %v830
        %v891 = vpack.c.bf16 %v835, %v831
        %v892 = vpack.c.bf16 %v840, %v836
        %v893 = vpack.c.bf16 %v841, %v837
        %v894 = vpack.c.bf16 %v842, %v838
        %v895 = vpack.c.bf16 %v843, %v839
        %v896 = vpack.c.bf16 %v848, %v844
        %v897 = vpack.c.bf16 %v849, %v845
        %v898 = vpack.c.bf16 %v850, %v846
        %v899 = vpack.c.bf16 %v851, %v847
        %v900 = vpack.c.bf16 %v856, %v852
        %v901 = vpack.c.bf16 %v857, %v853
        %v902 = vpack.c.bf16 %v858, %v854
        %v903 = vpack.c.bf16 %v859, %v855
        %v904 = vpack.c.bf16 %v864, %v860
        %v905 = vpack.c.bf16 %v865, %v861
        %v906 = vpack.c.bf16 %v866, %v862
        %v907 = vpack.c.bf16 %v867, %v863
        %v908 = vpack.c.bf16 %v872, %v868
        %v909 = vpack.c.bf16 %v873, %v869
        %v910 = vpack.c.bf16 %v874, %v870
        %v911 = vpack.c.bf16 %v875, %v871
        %v912 = vpack.c.bf16 %v880, %v876
        %v913 = vpack.c.bf16 %v881, %v877
        %v914 = vpack.c.bf16 %v882, %v878
        %v915 = vpack.c.bf16 %v883, %v879
        %v916 = vld [vmem:[#allocation8] sm:$0xff]
        %v917 = vld [vmem:[#allocation8 + $0x8] sm:$0xff]
        %v918 = vld [vmem:[#allocation8 + $0x10] sm:$0xff]
        %v919 = vld [vmem:[#allocation8 + $0x18] sm:$0xff]
        %v920 = vld [vmem:[#allocation8 + $0x20] sm:$0xff]
        %v921 = vld [vmem:[#allocation8 + $0x28] sm:$0xff]
        %v922 = vld [vmem:[#allocation8 + $0x30] sm:$0xff]
        %v923 = vld [vmem:[#allocation8 + $0x38] sm:$0xff]
        %v924 = vld [vmem:[#allocation8 + $0x40] sm:$0xff]
        %v925 = vld [vmem:[#allocation8 + $0x48] sm:$0xff]
        %v926 = vld [vmem:[#allocation8 + $0x50] sm:$0xff]
        %v927 = vld [vmem:[#allocation8 + $0x58] sm:$0xff]
        %v928 = vld [vmem:[#allocation8 + $0x60] sm:$0xff]
        %v929 = vld [vmem:[#allocation8 + $0x68] sm:$0xff]
        %v930 = vld [vmem:[#allocation8 + $0x70] sm:$0xff]
        %v931 = vld [vmem:[#allocation8 + $0x78] sm:$0xff]
        %v932 = vld [vmem:[#allocation8 + $0x80] sm:$0xff]
        %v933 = vld [vmem:[#allocation8 + $0x88] sm:$0xff]
        %v934 = vld [vmem:[#allocation8 + $0x90] sm:$0xff]
        %v935 = vld [vmem:[#allocation8 + $0x98] sm:$0xff]
        %v936 = vld [vmem:[#allocation8 + $0xa0] sm:$0xff]
        %v937 = vld [vmem:[#allocation8 + $0xa8] sm:$0xff]
        %v938 = vld [vmem:[#allocation8 + $0xb0] sm:$0xff]
        %v939 = vld [vmem:[#allocation8 + $0xb8] sm:$0xff]
        %v940 = vld [vmem:[#allocation8 + $0xc0] sm:$0xff]
        %v941 = vld [vmem:[#allocation8 + $0xc8] sm:$0xff]
        %v942 = vld [vmem:[#allocation8 + $0xd0] sm:$0xff]
        %v943 = vld [vmem:[#allocation8 + $0xd8] sm:$0xff]
        %v944 = vld [vmem:[#allocation8 + $0xe0] sm:$0xff]
        %v945 = vld [vmem:[#allocation8 + $0xe8] sm:$0xff]
        %v946 = vld [vmem:[#allocation8 + $0xf0] sm:$0xff]
        %v947 = vld [vmem:[#allocation8 + $0xf8] sm:$0xff]
        %v948 = vld [vmem:[#allocation8 + $0x100] sm:$0xff]
        %v949 = vld [vmem:[#allocation8 + $0x108] sm:$0xff]
        %v950 = vld [vmem:[#allocation8 + $0x110] sm:$0xff]
        %v951 = vld [vmem:[#allocation8 + $0x118] sm:$0xff]
        %v952 = vld [vmem:[#allocation8 + $0x120] sm:$0xff]
        %v953 = vld [vmem:[#allocation8 + $0x128] sm:$0xff]
        %v954 = vld [vmem:[#allocation8 + $0x130] sm:$0xff]
        %v955 = vld [vmem:[#allocation8 + $0x138] sm:$0xff]
        %v956 = vld [vmem:[#allocation8 + $0x140] sm:$0xff]
        %v957 = vld [vmem:[#allocation8 + $0x148] sm:$0xff]
        %v958 = vld [vmem:[#allocation8 + $0x150] sm:$0xff]
        %v959 = vld [vmem:[#allocation8 + $0x158] sm:$0xff]
        %v960 = vld [vmem:[#allocation8 + $0x160] sm:$0xff]
        %v961 = vld [vmem:[#allocation8 + $0x168] sm:$0xff]
        %v962 = vld [vmem:[#allocation8 + $0x170] sm:$0xff]
        %v963 = vld [vmem:[#allocation8 + $0x178] sm:$0xff]
        %v964 = vld [vmem:[#allocation8 + $0x180] sm:$0xff]
        %v965 = vld [vmem:[#allocation8 + $0x188] sm:$0xff]
        %v966 = vld [vmem:[#allocation8 + $0x190] sm:$0xff]
        %v967 = vld [vmem:[#allocation8 + $0x198] sm:$0xff]
        %v968 = vld [vmem:[#allocation8 + $0x1a0] sm:$0xff]
        %v969 = vld [vmem:[#allocation8 + $0x1a8] sm:$0xff]
        %v970 = vld [vmem:[#allocation8 + $0x1b0] sm:$0xff]
        %v971 = vld [vmem:[#allocation8 + $0x1b8] sm:$0xff]
        %v972 = vld [vmem:[#allocation8 + $0x1c0] sm:$0xff]
        %v973 = vld [vmem:[#allocation8 + $0x1c8] sm:$0xff]
        %v974 = vld [vmem:[#allocation8 + $0x1d0] sm:$0xff]
        %v975 = vld [vmem:[#allocation8 + $0x1d8] sm:$0xff]
        %v976 = vld [vmem:[#allocation8 + $0x1e0] sm:$0xff]
        %v977 = vld [vmem:[#allocation8 + $0x1e8] sm:$0xff]
        %v978 = vld [vmem:[#allocation8 + $0x1f0] sm:$0xff]
        %v979 = vld [vmem:[#allocation8 + $0x1f8] sm:$0xff]
        %v980 = vld [vmem:[%s4] sm:$0x3]
        %v982 = vlaneseq
        %v983 = vshrl.u32 %v982, 7
        %v984 = vsub.s32 0, %v983
        %v985 = vrot.slane %v980, %v984
        %v986 = vlaneseq
        %v987 = vshrl.u32 %v986, 7
        %v988 = vsub.s32 1, %v987
        %v989 = vrot.slane %v980, %v988
        %v1056 = vunpack.c.l.b16 %v916
        %v1057 = vunpack.c.h.b16 %v916
        %v1058 = vunpack.c.l.b16 %v917
        %v1059 = vunpack.c.h.b16 %v917
        %v1060 = vunpack.c.l.b16 %v918
        %v1061 = vunpack.c.h.b16 %v918
        %v1062 = vunpack.c.l.b16 %v919
        %v1063 = vunpack.c.h.b16 %v919
        %v1064 = vunpack.c.l.b16 %v920
        %v1065 = vunpack.c.h.b16 %v920
        %v1066 = vunpack.c.l.b16 %v921
        %v1067 = vunpack.c.h.b16 %v921
        %v1068 = vunpack.c.l.b16 %v922
        %v1069 = vunpack.c.h.b16 %v922
        %v1070 = vunpack.c.l.b16 %v923
        %v1071 = vunpack.c.h.b16 %v923
        %v1072 = vunpack.c.l.b16 %v924
        %v1073 = vunpack.c.h.b16 %v924
        %v1074 = vunpack.c.l.b16 %v925
        %v1075 = vunpack.c.h.b16 %v925
        %v1076 = vunpack.c.l.b16 %v926
        %v1077 = vunpack.c.h.b16 %v926
        %v1078 = vunpack.c.l.b16 %v927
        %v1079 = vunpack.c.h.b16 %v927
        %v1080 = vunpack.c.l.b16 %v928
        %v1081 = vunpack.c.h.b16 %v928
        %v1082 = vunpack.c.l.b16 %v929
        %v1083 = vunpack.c.h.b16 %v929
        %v1084 = vunpack.c.l.b16 %v930
        %v1085 = vunpack.c.h.b16 %v930
        %v1086 = vunpack.c.l.b16 %v931
        %v1087 = vunpack.c.h.b16 %v931
        %v1088 = vunpack.c.l.b16 %v932
        %v1089 = vunpack.c.h.b16 %v932
        %v1090 = vunpack.c.l.b16 %v933
        %v1091 = vunpack.c.h.b16 %v933
        %v1092 = vunpack.c.l.b16 %v934
        %v1093 = vunpack.c.h.b16 %v934
        %v1094 = vunpack.c.l.b16 %v935
        %v1095 = vunpack.c.h.b16 %v935
        %v1096 = vunpack.c.l.b16 %v936
        %v1097 = vunpack.c.h.b16 %v936
        %v1098 = vunpack.c.l.b16 %v937
        %v1099 = vunpack.c.h.b16 %v937
        %v1100 = vunpack.c.l.b16 %v938
        %v1101 = vunpack.c.h.b16 %v938
        %v1102 = vunpack.c.l.b16 %v939
        %v1103 = vunpack.c.h.b16 %v939
        %v1104 = vunpack.c.l.b16 %v940
        %v1105 = vunpack.c.h.b16 %v940
        %v1106 = vunpack.c.l.b16 %v941
        %v1107 = vunpack.c.h.b16 %v941
        %v1108 = vunpack.c.l.b16 %v942
        %v1109 = vunpack.c.h.b16 %v942
        %v1110 = vunpack.c.l.b16 %v943
        %v1111 = vunpack.c.h.b16 %v943
        %v1112 = vunpack.c.l.b16 %v944
        %v1113 = vunpack.c.h.b16 %v944
        %v1114 = vunpack.c.l.b16 %v945
        %v1115 = vunpack.c.h.b16 %v945
        %v1116 = vunpack.c.l.b16 %v946
        %v1117 = vunpack.c.h.b16 %v946
        %v1118 = vunpack.c.l.b16 %v947
        %v1119 = vunpack.c.h.b16 %v947
        %v1120 = vunpack.c.l.b16 %v948
        %v1121 = vunpack.c.h.b16 %v948
        %v1122 = vunpack.c.l.b16 %v949
        %v1123 = vunpack.c.h.b16 %v949
        %v1124 = vunpack.c.l.b16 %v950
        %v1125 = vunpack.c.h.b16 %v950
        %v1126 = vunpack.c.l.b16 %v951
        %v1127 = vunpack.c.h.b16 %v951
        %v1128 = vunpack.c.l.b16 %v952
        %v1129 = vunpack.c.h.b16 %v952
        %v1130 = vunpack.c.l.b16 %v953
        %v1131 = vunpack.c.h.b16 %v953
        %v1132 = vunpack.c.l.b16 %v954
        %v1133 = vunpack.c.h.b16 %v954
        %v1134 = vunpack.c.l.b16 %v955
        %v1135 = vunpack.c.h.b16 %v955
        %v1136 = vunpack.c.l.b16 %v956
        %v1137 = vunpack.c.h.b16 %v956
        %v1138 = vunpack.c.l.b16 %v957
        %v1139 = vunpack.c.h.b16 %v957
        %v1140 = vunpack.c.l.b16 %v958
        %v1141 = vunpack.c.h.b16 %v958
        %v1142 = vunpack.c.l.b16 %v959
        %v1143 = vunpack.c.h.b16 %v959
        %v1144 = vunpack.c.l.b16 %v960
        %v1145 = vunpack.c.h.b16 %v960
        %v1146 = vunpack.c.l.b16 %v961
        %v1147 = vunpack.c.h.b16 %v961
        %v1148 = vunpack.c.l.b16 %v962
        %v1149 = vunpack.c.h.b16 %v962
        %v1150 = vunpack.c.l.b16 %v963
        %v1151 = vunpack.c.h.b16 %v963
        %v1152 = vunpack.c.l.b16 %v964
        %v1153 = vunpack.c.h.b16 %v964
        %v1154 = vunpack.c.l.b16 %v965
        %v1155 = vunpack.c.h.b16 %v965
        %v1156 = vunpack.c.l.b16 %v966
        %v1157 = vunpack.c.h.b16 %v966
        %v1158 = vunpack.c.l.b16 %v967
        %v1159 = vunpack.c.h.b16 %v967
        %v1160 = vunpack.c.l.b16 %v968
        %v1161 = vunpack.c.h.b16 %v968
        %v1162 = vunpack.c.l.b16 %v969
        %v1163 = vunpack.c.h.b16 %v969
        %v1164 = vunpack.c.l.b16 %v970
        %v1165 = vunpack.c.h.b16 %v970
        %v1166 = vunpack.c.l.b16 %v971
        %v1167 = vunpack.c.h.b16 %v971
        %v1168 = vunpack.c.l.b16 %v972
        %v1169 = vunpack.c.h.b16 %v972
        %v1170 = vunpack.c.l.b16 %v973
        %v1171 = vunpack.c.h.b16 %v973
        %v1172 = vunpack.c.l.b16 %v974
        %v1173 = vunpack.c.h.b16 %v974
        %v1174 = vunpack.c.l.b16 %v975
        %v1175 = vunpack.c.h.b16 %v975
        %v1176 = vunpack.c.l.b16 %v976
        %v1177 = vunpack.c.h.b16 %v976
        %v1178 = vunpack.c.l.b16 %v977
        %v1179 = vunpack.c.h.b16 %v977
        %v1180 = vunpack.c.l.b16 %v978
        %v1181 = vunpack.c.h.b16 %v978
        %v1182 = vunpack.c.l.b16 %v979
        %v1183 = vunpack.c.h.b16 %v979
        %v1184 = vpack.c.b16 %v1058, %v1056
        %v1185 = vpack.c.b16 %v1059, %v1057
        %v1186 = vpack.c.b16 %v1062, %v1060
        %v1187 = vpack.c.b16 %v1063, %v1061
        %v1188 = vpack.c.b16 %v1066, %v1064
        %v1189 = vpack.c.b16 %v1067, %v1065
        %v1190 = vpack.c.b16 %v1070, %v1068
        %v1191 = vpack.c.b16 %v1071, %v1069
        %v1192 = vpack.c.b16 %v1074, %v1072
        %v1193 = vpack.c.b16 %v1075, %v1073
        %v1194 = vpack.c.b16 %v1078, %v1076
        %v1195 = vpack.c.b16 %v1079, %v1077
        %v1196 = vpack.c.b16 %v1082, %v1080
        %v1197 = vpack.c.b16 %v1083, %v1081
        %v1198 = vpack.c.b16 %v1086, %v1084
        %v1199 = vpack.c.b16 %v1087, %v1085
        %v1200 = vpack.c.b16 %v1090, %v1088
        %v1201 = vpack.c.b16 %v1091, %v1089
        %v1202 = vpack.c.b16 %v1094, %v1092
        %v1203 = vpack.c.b16 %v1095, %v1093
        %v1204 = vpack.c.b16 %v1098, %v1096
        %v1205 = vpack.c.b16 %v1099, %v1097
        %v1206 = vpack.c.b16 %v1102, %v1100
        %v1207 = vpack.c.b16 %v1103, %v1101
        %v1208 = vpack.c.b16 %v1106, %v1104
        %v1209 = vpack.c.b16 %v1107, %v1105
        %v1210 = vpack.c.b16 %v1110, %v1108
        %v1211 = vpack.c.b16 %v1111, %v1109
        %v1212 = vpack.c.b16 %v1114, %v1112
        %v1213 = vpack.c.b16 %v1115, %v1113
        %v1214 = vpack.c.b16 %v1118, %v1116
        %v1215 = vpack.c.b16 %v1119, %v1117
        %v1216 = vpack.c.b16 %v1122, %v1120
        %v1217 = vpack.c.b16 %v1123, %v1121
        %v1218 = vpack.c.b16 %v1126, %v1124
        %v1219 = vpack.c.b16 %v1127, %v1125
        %v1220 = vpack.c.b16 %v1130, %v1128
        %v1221 = vpack.c.b16 %v1131, %v1129
        %v1222 = vpack.c.b16 %v1134, %v1132
        %v1223 = vpack.c.b16 %v1135, %v1133
        %v1224 = vpack.c.b16 %v1138, %v1136
        %v1225 = vpack.c.b16 %v1139, %v1137
        %v1226 = vpack.c.b16 %v1142, %v1140
        %v1227 = vpack.c.b16 %v1143, %v1141
        %v1228 = vpack.c.b16 %v1146, %v1144
        %v1229 = vpack.c.b16 %v1147, %v1145
        %v1230 = vpack.c.b16 %v1150, %v1148
        %v1231 = vpack.c.b16 %v1151, %v1149
        %v1232 = vpack.c.b16 %v1154, %v1152
        %v1233 = vpack.c.b16 %v1155, %v1153
        %v1234 = vpack.c.b16 %v1158, %v1156
        %v1235 = vpack.c.b16 %v1159, %v1157
        %v1236 = vpack.c.b16 %v1162, %v1160
        %v1237 = vpack.c.b16 %v1163, %v1161
        %v1238 = vpack.c.b16 %v1166, %v1164
        %v1239 = vpack.c.b16 %v1167, %v1165
        %v1240 = vpack.c.b16 %v1170, %v1168
        %v1241 = vpack.c.b16 %v1171, %v1169
        %v1242 = vpack.c.b16 %v1174, %v1172
        %v1243 = vpack.c.b16 %v1175, %v1173
        %v1244 = vpack.c.b16 %v1178, %v1176
        %v1245 = vpack.c.b16 %v1179, %v1177
        %v1246 = vpack.c.b16 %v1182, %v1180
        %v1247 = vpack.c.b16 %v1183, %v1181
        %1312 = vmatprep.subr.bf16.mxu0 %v1199
        %1313 = vmatpush1.bf16.msra.mxu0 %v1198
        %1314 = vmatprep.subr.bf16.mxu0 %v1197
        %1315 = vmatpush1.bf16.msra.mxu0 %v1196
        %1316 = vmatprep.subr.bf16.mxu0 %v1195
        %1317 = vmatpush1.bf16.msra.mxu0 %v1194
        %1318 = vmatprep.subr.bf16.mxu0 %v1193
        %1319 = vmatpush1.bf16.msra.mxu0 %v1192
        %1320 = vmatprep.subr.bf16.mxu0 %v1191
        %1321 = vmatpush1.bf16.msra.mxu0 %v1190
        %1322 = vmatprep.subr.bf16.mxu0 %v1189
        %1323 = vmatpush1.bf16.msra.mxu0 %v1188
        %1324 = vmatprep.subr.bf16.mxu0 %v1187
        %1325 = vmatpush1.bf16.msra.mxu0 %v1186
        %1326 = vmatprep.subr.bf16.mxu0 %v1185
        %1327 = vmatpush1.bf16.msra.mxu0 %v1184
        %1328 = vmatprep.subr.bf16.mxu0 %v1215
        %1329 = vmatpush2.bf16.msra.mxu0 %v1214
        %1330 = vmatprep.subr.bf16.mxu0 %v1213
        %1331 = vmatpush2.bf16.msra.mxu0 %v1212
        %1332 = vmatprep.subr.bf16.mxu0 %v1211
        %1333 = vmatpush2.bf16.msra.mxu0 %v1210
        %1334 = vmatprep.subr.bf16.mxu0 %v1209
        %1335 = vmatpush2.bf16.msra.mxu0 %v1208
        %1336 = vmatprep.subr.bf16.mxu0 %v1207
        %1337 = vmatpush2.bf16.msra.mxu0 %v1206
        %1338 = vmatprep.subr.bf16.mxu0 %v1205
        %1339 = vmatpush2.bf16.msra.mxu0 %v1204
        %1340 = vmatprep.subr.bf16.mxu0 %v1203
        %1341 = vmatpush2.bf16.msra.mxu0 %v1202
        %1342 = vmatprep.subr.bf16.mxu0 %v1201
        %1343 = vmatpush2.bf16.msra.mxu0 %v1200
        %1344 = vmatprep.mubr.bf16.mxu0 %v885
        %1345 = vmatmul.mubr.bf16.gmra.mxu0 %v884
        %v1346 = vpop.f32.mrf.mxu0
        %v1347 = vadd.f32 %v985, %v1346
        %v1348 = vpop.f32.mrf.mxu0
        %v1349 = vadd.f32 %v989, %v1348
        %v1350 = vpop.f32.mrf.mxu0
        %v1351 = vadd.f32 %v985, %v1350
        %v1352 = vpop.f32.mrf.mxu0
        %v1353 = vadd.f32 %v989, %v1352
        %1354 = vmatprep.mubr.bf16.mxu0 %v889
        %1355 = vmatmul.mubr.bf16.gmra.mxu0 %v888
        %v1356 = vpop.f32.mrf.mxu0
        %v1357 = vadd.f32 %v985, %v1356
        %v1358 = vpop.f32.mrf.mxu0
        %v1359 = vadd.f32 %v989, %v1358
        %v1360 = vpop.f32.mrf.mxu0
        %v1361 = vadd.f32 %v985, %v1360
        %v1362 = vpop.f32.mrf.mxu0
        %v1363 = vadd.f32 %v989, %v1362
        %1364 = vmatprep.mubr.bf16.mxu0 %v893
        %1365 = vmatmul.mubr.bf16.gmra.mxu0 %v892
        %v1366 = vpop.f32.mrf.mxu0
        %v1367 = vadd.f32 %v985, %v1366
        %v1368 = vpop.f32.mrf.mxu0
        %v1369 = vadd.f32 %v989, %v1368
        %v1370 = vpop.f32.mrf.mxu0
        %v1371 = vadd.f32 %v985, %v1370
        %v1372 = vpop.f32.mrf.mxu0
        %v1373 = vadd.f32 %v989, %v1372
        %1374 = vmatprep.mubr.bf16.mxu0 %v897
        %1375 = vmatmul.mubr.bf16.gmra.mxu0 %v896
        %v1376 = vpop.f32.mrf.mxu0
        %v1377 = vadd.f32 %v985, %v1376
        %v1378 = vpop.f32.mrf.mxu0
        %v1379 = vadd.f32 %v989, %v1378
        %v1380 = vpop.f32.mrf.mxu0
        %v1381 = vadd.f32 %v985, %v1380
        %v1382 = vpop.f32.mrf.mxu0
        %v1383 = vadd.f32 %v989, %v1382
        %1384 = vmatprep.mubr.bf16.mxu0 %v901
        %1385 = vmatmul.mubr.bf16.gmra.mxu0 %v900
        %v1386 = vpop.f32.mrf.mxu0
        %v1387 = vadd.f32 %v985, %v1386
        %v1388 = vpop.f32.mrf.mxu0
        %v1389 = vadd.f32 %v989, %v1388
        %v1390 = vpop.f32.mrf.mxu0
        %v1391 = vadd.f32 %v985, %v1390
        %v1392 = vpop.f32.mrf.mxu0
        %v1393 = vadd.f32 %v989, %v1392
        %1394 = vmatprep.mubr.bf16.mxu0 %v905
        %1395 = vmatmul.mubr.bf16.gmra.mxu0 %v904
        %v1396 = vpop.f32.mrf.mxu0
        %v1397 = vadd.f32 %v985, %v1396
        %v1398 = vpop.f32.mrf.mxu0
        %v1399 = vadd.f32 %v989, %v1398
        %v1400 = vpop.f32.mrf.mxu0
        %v1401 = vadd.f32 %v985, %v1400
        %v1402 = vpop.f32.mrf.mxu0
        %v1403 = vadd.f32 %v989, %v1402
        %1404 = vmatprep.mubr.bf16.mxu0 %v909
        %1405 = vmatmul.mubr.bf16.gmra.mxu0 %v908
        %v1406 = vpop.f32.mrf.mxu0
        %v1407 = vadd.f32 %v985, %v1406
        %v1408 = vpop.f32.mrf.mxu0
        %v1409 = vadd.f32 %v989, %v1408
        %v1410 = vpop.f32.mrf.mxu0
        %v1411 = vadd.f32 %v985, %v1410
        %v1412 = vpop.f32.mrf.mxu0
        %v1413 = vadd.f32 %v989, %v1412
        %1414 = vmatprep.mubr.bf16.mxu0 %v913
        %1415 = vmatmul.mubr.bf16.gmra.mxu0 %v912
        %v1416 = vpop.f32.mrf.mxu0
        %v1417 = vadd.f32 %v985, %v1416
        %v1418 = vpop.f32.mrf.mxu0
        %v1419 = vadd.f32 %v989, %v1418
        %v1420 = vpop.f32.mrf.mxu0
        %v1421 = vadd.f32 %v985, %v1420
        %v1422 = vpop.f32.mrf.mxu0
        %v1423 = vadd.f32 %v989, %v1422
        %1424 = vdwg.mxu0
        %1425 = vmatprep.subr.bf16.mxu0 %v1231
        %1426 = vmatpush1.bf16.msra.mxu0 %v1230
        %1427 = vmatprep.subr.bf16.mxu0 %v1229
        %1428 = vmatpush1.bf16.msra.mxu0 %v1228
        %1429 = vmatprep.subr.bf16.mxu0 %v1227
        %1430 = vmatpush1.bf16.msra.mxu0 %v1226
        %1431 = vmatprep.subr.bf16.mxu0 %v1225
        %1432 = vmatpush1.bf16.msra.mxu0 %v1224
        %1433 = vmatprep.subr.bf16.mxu0 %v1223
        %1434 = vmatpush1.bf16.msra.mxu0 %v1222
        %1435 = vmatprep.subr.bf16.mxu0 %v1221
        %1436 = vmatpush1.bf16.msra.mxu0 %v1220
        %1437 = vmatprep.subr.bf16.mxu0 %v1219
        %1438 = vmatpush1.bf16.msra.mxu0 %v1218
        %1439 = vmatprep.subr.bf16.mxu0 %v1217
        %1440 = vmatpush1.bf16.msra.mxu0 %v1216
        %1441 = vmatprep.subr.bf16.mxu0 %v1247
        %1442 = vmatpush2.bf16.msra.mxu0 %v1246
        %1443 = vmatprep.subr.bf16.mxu0 %v1245
        %1444 = vmatpush2.bf16.msra.mxu0 %v1244
        %1445 = vmatprep.subr.bf16.mxu0 %v1243
        %1446 = vmatpush2.bf16.msra.mxu0 %v1242
        %1447 = vmatprep.subr.bf16.mxu0 %v1241
        %1448 = vmatpush2.bf16.msra.mxu0 %v1240
        %1449 = vmatprep.subr.bf16.mxu0 %v1239
        %1450 = vmatpush2.bf16.msra.mxu0 %v1238
        %1451 = vmatprep.subr.bf16.mxu0 %v1237
        %1452 = vmatpush2.bf16.msra.mxu0 %v1236
        %1453 = vmatprep.subr.bf16.mxu0 %v1235
        %1454 = vmatpush2.bf16.msra.mxu0 %v1234
        %1455 = vmatprep.subr.bf16.mxu0 %v1233
        %1456 = vmatpush2.bf16.msra.mxu0 %v1232
        %1457 = vmatprep.mubr.bf16.mxu0 %v887
        %1458 = vmatmul.mubr.bf16.gmra.mxu0 %v886
        %v1459 = vpop.f32.mrf.mxu0
        %v1460 = vadd.f32 %v1347, %v1459
        %v1461 = vpop.f32.mrf.mxu0
        %v1462 = vadd.f32 %v1349, %v1461
        %v1463 = vpop.f32.mrf.mxu0
        %v1464 = vadd.f32 %v1351, %v1463
        %v1465 = vpop.f32.mrf.mxu0
        %v1466 = vadd.f32 %v1353, %v1465
        %1467 = vmatprep.mubr.bf16.mxu0 %v891
        %1468 = vmatmul.mubr.bf16.gmra.mxu0 %v890
        %v1469 = vpop.f32.mrf.mxu0
        %v1470 = vadd.f32 %v1357, %v1469
        %v1471 = vpop.f32.mrf.mxu0
        %v1472 = vadd.f32 %v1359, %v1471
        %v1473 = vpop.f32.mrf.mxu0
        %v1474 = vadd.f32 %v1361, %v1473
        %v1475 = vpop.f32.mrf.mxu0
        %v1476 = vadd.f32 %v1363, %v1475
        %1477 = vmatprep.mubr.bf16.mxu0 %v895
        %1478 = vmatmul.mubr.bf16.gmra.mxu0 %v894
        %v1479 = vpop.f32.mrf.mxu0
        %v1480 = vadd.f32 %v1367, %v1479
        %v1481 = vpop.f32.mrf.mxu0
        %v1482 = vadd.f32 %v1369, %v1481
        %v1483 = vpop.f32.mrf.mxu0
        %v1484 = vadd.f32 %v1371, %v1483
        %v1485 = vpop.f32.mrf.mxu0
        %v1486 = vadd.f32 %v1373, %v1485
        %1487 = vmatprep.mubr.bf16.mxu0 %v899
        %1488 = vmatmul.mubr.bf16.gmra.mxu0 %v898
        %v1489 = vpop.f32.mrf.mxu0
        %v1490 = vadd.f32 %v1377, %v1489
        %v1491 = vpop.f32.mrf.mxu0
        %v1492 = vadd.f32 %v1379, %v1491
        %v1493 = vpop.f32.mrf.mxu0
        %v1494 = vadd.f32 %v1381, %v1493
        %v1495 = vpop.f32.mrf.mxu0
        %v1496 = vadd.f32 %v1383, %v1495
        %1497 = vmatprep.mubr.bf16.mxu0 %v903
        %1498 = vmatmul.mubr.bf16.gmra.mxu0 %v902
        %v1499 = vpop.f32.mrf.mxu0
        %v1500 = vadd.f32 %v1387, %v1499
        %v1501 = vpop.f32.mrf.mxu0
        %v1502 = vadd.f32 %v1389, %v1501
        %v1503 = vpop.f32.mrf.mxu0
        %v1504 = vadd.f32 %v1391, %v1503
        %v1505 = vpop.f32.mrf.mxu0
        %v1506 = vadd.f32 %v1393, %v1505
        %1507 = vmatprep.mubr.bf16.mxu0 %v907
        %1508 = vmatmul.mubr.bf16.gmra.mxu0 %v906
        %v1509 = vpop.f32.mrf.mxu0
        %v1510 = vadd.f32 %v1397, %v1509
        %v1511 = vpop.f32.mrf.mxu0
        %v1512 = vadd.f32 %v1399, %v1511
        %v1513 = vpop.f32.mrf.mxu0
        %v1514 = vadd.f32 %v1401, %v1513
        %v1515 = vpop.f32.mrf.mxu0
        %v1516 = vadd.f32 %v1403, %v1515
        %1517 = vmatprep.mubr.bf16.mxu0 %v911
        %1518 = vmatmul.mubr.bf16.gmra.mxu0 %v910
        %v1519 = vpop.f32.mrf.mxu0
        %v1520 = vadd.f32 %v1407, %v1519
        %v1521 = vpop.f32.mrf.mxu0
        %v1522 = vadd.f32 %v1409, %v1521
        %v1523 = vpop.f32.mrf.mxu0
        %v1524 = vadd.f32 %v1411, %v1523
        %v1525 = vpop.f32.mrf.mxu0
        %v1526 = vadd.f32 %v1413, %v1525
        %1527 = vmatprep.mubr.bf16.mxu0 %v915
        %1528 = vmatmul.mubr.bf16.gmra.mxu0 %v914
        %v1529 = vpop.f32.mrf.mxu0
        %v1530 = vadd.f32 %v1417, %v1529
        %v1531 = vpop.f32.mrf.mxu0
        %v1532 = vadd.f32 %v1419, %v1531
        %v1533 = vpop.f32.mrf.mxu0
        %v1534 = vadd.f32 %v1421, %v1533
        %v1535 = vpop.f32.mrf.mxu0
        %v1536 = vadd.f32 %v1423, %v1535
        %1537 = vdwg.mxu0
        %v1538 = vmax.f32 %v1460, 0.0
        %v1539 = vmax.f32 %v1462, 0.0
        %v1540 = vmax.f32 %v1464, 0.0
        %v1541 = vmax.f32 %v1466, 0.0
        %v1542 = vmax.f32 %v1470, 0.0
        %v1543 = vmax.f32 %v1472, 0.0
        %v1544 = vmax.f32 %v1474, 0.0
        %v1545 = vmax.f32 %v1476, 0.0
        %v1546 = vmax.f32 %v1480, 0.0
        %v1547 = vmax.f32 %v1482, 0.0
        %v1548 = vmax.f32 %v1484, 0.0
        %v1549 = vmax.f32 %v1486, 0.0
        %v1550 = vmax.f32 %v1490, 0.0
        %v1551 = vmax.f32 %v1492, 0.0
        %v1552 = vmax.f32 %v1494, 0.0
        %v1553 = vmax.f32 %v1496, 0.0
        %v1554 = vmax.f32 %v1500, 0.0
        %v1555 = vmax.f32 %v1502, 0.0
        %v1556 = vmax.f32 %v1504, 0.0
        %v1557 = vmax.f32 %v1506, 0.0
        %v1558 = vmax.f32 %v1510, 0.0
        %v1559 = vmax.f32 %v1512, 0.0
        %v1560 = vmax.f32 %v1514, 0.0
        %v1561 = vmax.f32 %v1516, 0.0
        %v1562 = vmax.f32 %v1520, 0.0
        %v1563 = vmax.f32 %v1522, 0.0
        %v1564 = vmax.f32 %v1524, 0.0
        %v1565 = vmax.f32 %v1526, 0.0
        %v1566 = vmax.f32 %v1530, 0.0
        %v1567 = vmax.f32 %v1532, 0.0
        %v1568 = vmax.f32 %v1534, 0.0
        %v1569 = vmax.f32 %v1536, 0.0
        %v1570 = vpack.c.bf16 %v1540, %v1538
        %v1571 = vpack.c.bf16 %v1541, %v1539
        %v1572 = vpack.c.bf16 %v1544, %v1542
        %v1573 = vpack.c.bf16 %v1545, %v1543
        %v1574 = vpack.c.bf16 %v1548, %v1546
        %v1575 = vpack.c.bf16 %v1549, %v1547
        %v1576 = vpack.c.bf16 %v1552, %v1550
        %v1577 = vpack.c.bf16 %v1553, %v1551
        %v1578 = vpack.c.bf16 %v1556, %v1554
        %v1579 = vpack.c.bf16 %v1557, %v1555
        %v1580 = vpack.c.bf16 %v1560, %v1558
        %v1581 = vpack.c.bf16 %v1561, %v1559
        %v1582 = vpack.c.bf16 %v1564, %v1562
        %v1583 = vpack.c.bf16 %v1565, %v1563
        %v1584 = vpack.c.bf16 %v1568, %v1566
        %v1585 = vpack.c.bf16 %v1569, %v1567
        %v1586 = vld [vmem:[#allocation10] sm:$0xf]
        %v1587 = vld [vmem:[#allocation10 + $0x4] sm:$0xf]
        %v1588 = vld [vmem:[#allocation10 + $0x8] sm:$0xf]
        %v1589 = vld [vmem:[#allocation10 + $0xc] sm:$0xf]
        %v1590 = vld [vmem:[#allocation10 + $0x10] sm:$0xf]
        %v1591 = vld [vmem:[#allocation10 + $0x14] sm:$0xf]
        %v1592 = vld [vmem:[#allocation10 + $0x18] sm:$0xf]
        %v1593 = vld [vmem:[#allocation10 + $0x1c] sm:$0xf]
        %v1594 = vld [vmem:[#allocation10 + $0x20] sm:$0xf]
        %v1595 = vld [vmem:[#allocation10 + $0x24] sm:$0xf]
        %v1596 = vld [vmem:[#allocation10 + $0x28] sm:$0xf]
        %v1597 = vld [vmem:[#allocation10 + $0x2c] sm:$0xf]
        %v1598 = vld [vmem:[#allocation10 + $0x30] sm:$0xf]
        %v1599 = vld [vmem:[#allocation10 + $0x34] sm:$0xf]
        %v1600 = vld [vmem:[#allocation10 + $0x38] sm:$0xf]
        %v1601 = vld [vmem:[#allocation10 + $0x3c] sm:$0xf]
        %v1602 = vld [vmem:[#allocation10 + $0x40] sm:$0xf]
        %v1603 = vld [vmem:[#allocation10 + $0x44] sm:$0xf]
        %v1604 = vld [vmem:[#allocation10 + $0x48] sm:$0xf]
        %v1605 = vld [vmem:[#allocation10 + $0x4c] sm:$0xf]
        %v1606 = vld [vmem:[#allocation10 + $0x50] sm:$0xf]
        %v1607 = vld [vmem:[#allocation10 + $0x54] sm:$0xf]
        %v1608 = vld [vmem:[#allocation10 + $0x58] sm:$0xf]
        %v1609 = vld [vmem:[#allocation10 + $0x5c] sm:$0xf]
        %v1610 = vld [vmem:[#allocation10 + $0x60] sm:$0xf]
        %v1611 = vld [vmem:[#allocation10 + $0x64] sm:$0xf]
        %v1612 = vld [vmem:[#allocation10 + $0x68] sm:$0xf]
        %v1613 = vld [vmem:[#allocation10 + $0x6c] sm:$0xf]
        %v1614 = vld [vmem:[#allocation10 + $0x70] sm:$0xf]
        %v1615 = vld [vmem:[#allocation10 + $0x74] sm:$0xf]
        %v1616 = vld [vmem:[#allocation10 + $0x78] sm:$0xf]
        %v1617 = vld [vmem:[#allocation10 + $0x7c] sm:$0xf]
        %v1618 = vld [vmem:[%s6] sm:$0x1]
        %v1620 = vlaneseq
        %v1621 = vshrl.u32 %v1620, 7
        %v1622 = vsub.s32 0, %v1621
        %v1623 = vrot.slane %v1618, %v1622
        %v1657 = vunpack.c.l.b16 %v1586
        %v1658 = vunpack.c.l.b16 %v1587
        %v1659 = vunpack.c.l.b16 %v1588
        %v1660 = vunpack.c.l.b16 %v1589
        %v1661 = vunpack.c.l.b16 %v1590
        %v1662 = vunpack.c.l.b16 %v1591
        %v1663 = vunpack.c.l.b16 %v1592
        %v1664 = vunpack.c.l.b16 %v1593
        %v1665 = vunpack.c.l.b16 %v1594
        %v1666 = vunpack.c.l.b16 %v1595
        %v1667 = vunpack.c.l.b16 %v1596
        %v1668 = vunpack.c.l.b16 %v1597
        %v1669 = vunpack.c.l.b16 %v1598
        %v1670 = vunpack.c.l.b16 %v1599
        %v1671 = vunpack.c.l.b16 %v1600
        %v1672 = vunpack.c.l.b16 %v1601
        %v1673 = vunpack.c.l.b16 %v1602
        %v1674 = vunpack.c.l.b16 %v1603
        %v1675 = vunpack.c.l.b16 %v1604
        %v1676 = vunpack.c.l.b16 %v1605
        %v1677 = vunpack.c.l.b16 %v1606
        %v1678 = vunpack.c.l.b16 %v1607
        %v1679 = vunpack.c.l.b16 %v1608
        %v1680 = vunpack.c.l.b16 %v1609
        %v1681 = vunpack.c.l.b16 %v1610
        %v1682 = vunpack.c.l.b16 %v1611
        %v1683 = vunpack.c.l.b16 %v1612
        %v1684 = vunpack.c.l.b16 %v1613
        %v1685 = vunpack.c.l.b16 %v1614
        %v1686 = vunpack.c.l.b16 %v1615
        %v1687 = vunpack.c.l.b16 %v1616
        %v1688 = vunpack.c.l.b16 %v1617
        %v1689 = vpack.c.b16 %v1658, %v1657
        %v1690 = vpack.c.b16 %v1660, %v1659
        %v1691 = vpack.c.b16 %v1662, %v1661
        %v1692 = vpack.c.b16 %v1664, %v1663
        %v1693 = vpack.c.b16 %v1666, %v1665
        %v1694 = vpack.c.b16 %v1668, %v1667
        %v1695 = vpack.c.b16 %v1670, %v1669
        %v1696 = vpack.c.b16 %v1672, %v1671
        %v1697 = vpack.c.b16 %v1674, %v1673
        %v1698 = vpack.c.b16 %v1676, %v1675
        %v1699 = vpack.c.b16 %v1678, %v1677
        %v1700 = vpack.c.b16 %v1680, %v1679
        %v1701 = vpack.c.b16 %v1682, %v1681
        %v1702 = vpack.c.b16 %v1684, %v1683
        %v1703 = vpack.c.b16 %v1686, %v1685
        %v1704 = vpack.c.b16 %v1688, %v1687
        %1721 = vmatprep.subr.bf16.mxu0 0
        %1722 = vmatpush1.bf16.msra.mxu0 %v1696
        %1723 = vmatprep.subr.bf16.mxu0 0
        %1724 = vmatpush1.bf16.msra.mxu0 %v1695
        %1725 = vmatprep.subr.bf16.mxu0 0
        %1726 = vmatpush1.bf16.msra.mxu0 %v1694
        %1727 = vmatprep.subr.bf16.mxu0 0
        %1728 = vmatpush1.bf16.msra.mxu0 %v1693
        %1729 = vmatprep.subr.bf16.mxu0 0
        %1730 = vmatpush1.bf16.msra.mxu0 %v1692
        %1731 = vmatprep.subr.bf16.mxu0 0
        %1732 = vmatpush1.bf16.msra.mxu0 %v1691
        %1733 = vmatprep.subr.bf16.mxu0 0
        %1734 = vmatpush1.bf16.msra.mxu0 %v1690
        %1735 = vmatprep.subr.bf16.mxu0 0
        %1736 = vmatpush1.bf16.msra.mxu0 %v1689
        %1737 = vmatprep.subr.bf16.mxu0 0
        %1738 = vmatpush2.bf16.msra.mxu0 %v1704
        %1739 = vmatprep.subr.bf16.mxu0 0
        %1740 = vmatpush2.bf16.msra.mxu0 %v1703
        %1741 = vmatprep.subr.bf16.mxu0 0
        %1742 = vmatpush2.bf16.msra.mxu0 %v1702
        %1743 = vmatprep.subr.bf16.mxu0 0
        %1744 = vmatpush2.bf16.msra.mxu0 %v1701
        %1745 = vmatprep.subr.bf16.mxu0 0
        %1746 = vmatpush2.bf16.msra.mxu0 %v1700
        %1747 = vmatprep.subr.bf16.mxu0 0
        %1748 = vmatpush2.bf16.msra.mxu0 %v1699
        %1749 = vmatprep.subr.bf16.mxu0 0
        %1750 = vmatpush2.bf16.msra.mxu0 %v1698
        %1751 = vmatprep.subr.bf16.mxu0 0
        %1752 = vmatpush2.bf16.msra.mxu0 %v1697
        %1753 = vmatprep.mubr.bf16.mxu0 %v1571
        %1754 = vmatmul.mubr.bf16.gmra.mxu0 %v1570
        %v1755 = vpop.f32.mrf.mxu0
        %v1756 = vadd.f32 %v1623, %v1755
        %v1757 = vpop.f32.mrf.mxu0
        %v1758 = vpop.f32.mrf.mxu0
        %v1759 = vadd.f32 %v1623, %v1758
        %v1760 = vpop.f32.mrf.mxu0
        %1761 = vmatprep.mubr.bf16.mxu0 %v1573
        %1762 = vmatmul.mubr.bf16.gmra.mxu0 %v1572
        %v1763 = vpop.f32.mrf.mxu0
        %v1764 = vadd.f32 %v1623, %v1763
        %v1765 = vpop.f32.mrf.mxu0
        %v1766 = vpop.f32.mrf.mxu0
        %v1767 = vadd.f32 %v1623, %v1766
        %v1768 = vpop.f32.mrf.mxu0
        %1769 = vmatprep.mubr.bf16.mxu0 %v1575
        %1770 = vmatmul.mubr.bf16.gmra.mxu0 %v1574
        %v1771 = vpop.f32.mrf.mxu0
        %v1772 = vadd.f32 %v1623, %v1771
        %v1773 = vpop.f32.mrf.mxu0
        %v1774 = vpop.f32.mrf.mxu0
        %v1775 = vadd.f32 %v1623, %v1774
        %v1776 = vpop.f32.mrf.mxu0
        %1777 = vmatprep.mubr.bf16.mxu0 %v1577
        %1778 = vmatmul.mubr.bf16.gmra.mxu0 %v1576
        %v1779 = vpop.f32.mrf.mxu0
        %v1780 = vadd.f32 %v1623, %v1779
        %v1781 = vpop.f32.mrf.mxu0
        %v1782 = vpop.f32.mrf.mxu0
        %v1783 = vadd.f32 %v1623, %v1782
        %v1784 = vpop.f32.mrf.mxu0
        %1785 = vmatprep.mubr.bf16.mxu0 %v1579
        %1786 = vmatmul.mubr.bf16.gmra.mxu0 %v1578
        %v1787 = vpop.f32.mrf.mxu0
        %v1788 = vadd.f32 %v1623, %v1787
        %v1789 = vpop.f32.mrf.mxu0
        %v1790 = vpop.f32.mrf.mxu0
        %v1791 = vadd.f32 %v1623, %v1790
        %v1792 = vpop.f32.mrf.mxu0
        %1793 = vmatprep.mubr.bf16.mxu0 %v1581
        %1794 = vmatmul.mubr.bf16.gmra.mxu0 %v1580
        %v1795 = vpop.f32.mrf.mxu0
        %v1796 = vadd.f32 %v1623, %v1795
        %v1797 = vpop.f32.mrf.mxu0
        %v1798 = vpop.f32.mrf.mxu0
        %v1799 = vadd.f32 %v1623, %v1798
        %v1800 = vpop.f32.mrf.mxu0
        %1801 = vmatprep.mubr.bf16.mxu0 %v1583
        %1802 = vmatmul.mubr.bf16.gmra.mxu0 %v1582
        %v1803 = vpop.f32.mrf.mxu0
        %v1804 = vadd.f32 %v1623, %v1803
        %v1805 = vpop.f32.mrf.mxu0
        %v1806 = vpop.f32.mrf.mxu0
        %v1807 = vadd.f32 %v1623, %v1806
        %v1808 = vpop.f32.mrf.mxu0
        %1809 = vmatprep.mubr.bf16.mxu0 %v1585
        %1810 = vmatmul.mubr.bf16.gmra.mxu0 %v1584
        %v1811 = vpop.f32.mrf.mxu0
        %v1812 = vadd.f32 %v1623, %v1811
        %v1813 = vpop.f32.mrf.mxu0
        %v1814 = vpop.f32.mrf.mxu0
        %v1815 = vadd.f32 %v1623, %v1814
        %v1816 = vpop.f32.mrf.mxu0
        %1817 = vdwg.mxu0
        %v1818 = vpack.c.bf16 %v1759, %v1756
        %v1819 = vpack.c.bf16 %v1767, %v1764
        %v1820 = vpack.c.bf16 %v1775, %v1772
        %v1821 = vpack.c.bf16 %v1783, %v1780
        %v1822 = vpack.c.bf16 %v1791, %v1788
        %v1823 = vpack.c.bf16 %v1799, %v1796
        %v1824 = vpack.c.bf16 %v1807, %v1804
        %v1825 = vpack.c.bf16 %v1815, %v1812
        %v1834 = vunpack.c.l.b16 %v1818
        %v1835 = vunpack.c.h.b16 %v1818
        %v1836 = vunpack.c.l.b16 %v1819
        %v1837 = vunpack.c.h.b16 %v1819
        %v1838 = vunpack.c.l.b16 %v1820
        %v1839 = vunpack.c.h.b16 %v1820
        %v1840 = vunpack.c.l.b16 %v1821
        %v1841 = vunpack.c.h.b16 %v1821
        %v1842 = vunpack.c.l.b16 %v1822
        %v1843 = vunpack.c.h.b16 %v1822
        %v1844 = vunpack.c.l.b16 %v1823
        %v1845 = vunpack.c.h.b16 %v1823
        %v1846 = vunpack.c.l.b16 %v1824
        %v1847 = vunpack.c.h.b16 %v1824
        %v1848 = vunpack.c.l.b16 %v1825
        %v1849 = vunpack.c.h.b16 %v1825
        %v1850 = vpack.c.b16 %v1834, %v1834
        %v1851 = vpack.c.b16 %v1835, %v1835
        %v1852 = vpack.c.b16 %v1836, %v1836
        %v1853 = vpack.c.b16 %v1837, %v1837
        %v1854 = vpack.c.b16 %v1838, %v1838
        %v1855 = vpack.c.b16 %v1839, %v1839
        %v1856 = vpack.c.b16 %v1840, %v1840
        %v1857 = vpack.c.b16 %v1841, %v1841
        %v1858 = vpack.c.b16 %v1842, %v1842
        %v1859 = vpack.c.b16 %v1843, %v1843
        %v1860 = vpack.c.b16 %v1844, %v1844
        %v1861 = vpack.c.b16 %v1845, %v1845
        %v1862 = vpack.c.b16 %v1846, %v1846
        %v1863 = vpack.c.b16 %v1847, %v1847
        %v1864 = vpack.c.b16 %v1848, %v1848
        %v1865 = vpack.c.b16 %v1849, %v1849
        %1882 = vst [vmem:[%s352] sm:$0xf] %v1850
        %1883 = vst [vmem:[%s352 + $0x4] sm:$0xf] %v1851
        %1884 = vst [vmem:[%s352 + $0x8] sm:$0xf] %v1852
        %1885 = vst [vmem:[%s352 + $0xc] sm:$0xf] %v1853
        %1886 = vst [vmem:[%s352 + $0x10] sm:$0xf] %v1854
        %1887 = vst [vmem:[%s352 + $0x14] sm:$0xf] %v1855
        %1888 = vst [vmem:[%s352 + $0x18] sm:$0xf] %v1856
        %1889 = vst [vmem:[%s352 + $0x1c] sm:$0xf] %v1857
        %1890 = vst [vmem:[%s352 + $0x20] sm:$0xf] %v1858
        %1891 = vst [vmem:[%s352 + $0x24] sm:$0xf] %v1859
        %1892 = vst [vmem:[%s352 + $0x28] sm:$0xf] %v1860
        %1893 = vst [vmem:[%s352 + $0x2c] sm:$0xf] %v1861
        %1894 = vst [vmem:[%s352 + $0x30] sm:$0xf] %v1862
        %1895 = vst [vmem:[%s352 + $0x34] sm:$0xf] %v1863
        %1896 = vst [vmem:[%s352 + $0x38] sm:$0xf] %v1864
        %1897 = vst [vmem:[%s352 + $0x3c] sm:$0xf] %v1865
        %s1898 = sand.u32 %s186, 1
        %s1899 = scalar_lea.sflag [#allocation4], %s1898
        %s1900 = sand.u32 %s186, 1
        %s1901 = smul.addr %s1900, 64
        %s1902 = scalar_lea.vmem [#allocation11], %s1901
        // Predicated region
        $region69: #{tpu_custom_call.1} parent=47 // pred_check
          %p1903 = pneg %p196
        $region70: #{tpu_custom_call.1} parent=47 // pred_check_branch
          %1905 = sbr.rel (%p1903) target = $region72
        $region71: #{tpu_custom_call.1} parent=47 // pred_region
          %s1906 = smul.u32 16, %s26
          %s1908 = ssub.s32 1024, 1024
          %1909 = vsyncadd %s1899, %s1908
          %s1910 = smul.addr %s1906, 64
          %s1911 = scalar_lea.hbm %s7, %s1910
          %s1912 = sshll.u32 %s1902, 4
          %s1913 = int_to_ptr.vmem [resolvable:$true] %s1912
          %1918 = dma.vmem_to_hbm [thread:$0]  %s1913, 1024, %s1911, %s1899, 64, 64, 4
        $region72: #{tpu_custom_call.1} parent=47 // pred_fallthru
          _
      $region48: #{tpu_custom_call.1} parent=5 // pred_fallthru
        _
      %p1919 = scmp.le.s32.totalorder 2, %s21
      // Predicated region
      $region73: #{tpu_custom_call.1} parent=5 // pred_check
        %p1920 = pneg %p1919
      $region74: #{tpu_custom_call.1} parent=5 // pred_check_branch
        %1922 = sbr.rel (%p1920) target = $region76
      $region75: #{tpu_custom_call.1} parent=5 // pred_region
        %s1923 = ssub.s32 %s21, 2
        // Predicated region
        $region77: #{tpu_custom_call.1} parent=75 // pred_check
          %p1924 = pneg %p202
        $region78: #{tpu_custom_call.1} parent=75 // pred_check_branch
          %1926 = sbr.rel (%p1924) target = $region80
        $region79: #{tpu_custom_call.1} parent=75 // pred_region
          %s1927 = sand.u32 %s187, 1
          %s1928 = scalar_lea.sflag [#allocation4], %s1927
          %s1929 = sand.u32 %s187, 1
          %s1930 = smul.addr %s1929, 64
          %s1931 = scalar_lea.vmem [#allocation11], %s1930
          %1932 = dma.done %s1928, 1024
        $region80: #{tpu_custom_call.1} parent=75 // pred_fallthru
          _
      $region76: #{tpu_custom_call.1} parent=5 // pred_fallthru
        _
    $region6: #{tpu_custom_call.1} parent=1 // loop_footer
      %s25 = sadd.s32 1, %s21
    $region7: #{tpu_custom_call.1} parent=1 // loop_footer_branch
      %20 = sbr.rel target = $region3
    $region8: #{tpu_custom_call.1} parent=1 // loop_exit
      _
    %1933 = vsyncpa [#allocation3], 1
    %s1934 = scalar_lea.sflag [#allocation3], 1
    %1935 = vsyncpa %s1934, 1
    %1936 = vsyncpa [#allocation6], 1
    %1937 = vsyncpa [#allocation9], 1
    %1938 = vsyncpa [#allocation4], 1
    %s1939 = scalar_lea.sflag [#allocation4], 1
    %1940 = vsyncpa %s1939, 1

</llo_original>
